<compile_context>
chip_gen: v7x
topology: tpu7x:2x2x1
jax: 0.10.0
libtpu: 0.0.40
codegen_flags: <defaults>
</compile_context>

<pallas_src>
import jax
import jax.numpy as jnp
from jax.experimental import pallas as pl
from jax.experimental.pallas import tpu as pltpu


def _round_up(x: int, m: int) -> int:
    return ((x + m - 1) // m) * m


def _tile_bytes_2d(rows: int, cols: int, dtype) -> int:
    # Conservative VMEM footprint of a 2-D buffer: round to (8, 128) layout tiles.
    return (_round_up(max(rows, 1), 8) * _round_up(max(cols, 1), 128)
            * jnp.dtype(dtype).itemsize)


def compose_kernel(x_ref, w1_ref, b1_ref, w2_ref, b2_ref, o_ref):
    # first(x): x @ W1 on the MXU with f32 accumulation, bias add in f32 (VPU).
    h = jnp.dot(x_ref[...], w1_ref[...], preferred_element_type=jnp.float32)
    h = h + b1_ref[...]
    # Feed the intermediate straight into the second matmul in the MXU-native
    # compute dtype -- no VMEM scratch store/reload (Mosaic spills only if
    # vregs actually overflow).
    h = h.astype(w2_ref.dtype)
    # second(h): h @ W2 + b2 (bias add again on the f32 accumulator).
    y = jnp.dot(h, w2_ref[...], preferred_element_type=jnp.float32)
    y = y + b2_ref[...]
    o_ref[...] = y.astype(o_ref.dtype)


def compose_forward(x, w1, b1, w2, b2, *, tile_m=512,
                    compute_dtype=jnp.bfloat16, out_dtype=None):
    N, d_in = x.shape
    d_hid = w1.shape[1]
    d_out = w2.shape[1]
    out_dtype = x.dtype if out_dtype is None else out_dtype

    # ---- row tiling ---------------------------------------------------------
    # Multiple of 8 (sublane); clamp so the row grid has at least 2 steps:
    # grid==1 would leave one v7x TensorCore idle and kill pipeline overlap.
    tile_m = max(8, _round_up(tile_m, 8))
    if N > 8:
        tile_m = min(tile_m, max(8, _round_up(pl.cdiv(N, 2), 8)))
    grid = (pl.cdiv(N, tile_m),)   # partial last block is masked by Pallas

    # ---- operand prep: one cast each, no padding, no f32 round-trip ---------
    x_c = x.astype(compute_dtype)
    w1_c = w1.astype(compute_dtype)
    w2_c = w2.astype(compute_dtype)
    b1_c = b1.reshape(1, d_hid).astype(jnp.float32)   # bias add on f32 accumulator
    b2_c = b2.reshape(1, d_out).astype(jnp.float32)

    # ---- explicit VMEM budget (default scoped limit is far below physical) --
    est = (2 * _tile_bytes_2d(tile_m, d_in, compute_dtype)      # x tile  (x2 buffers)
           + 2 * _tile_bytes_2d(tile_m, d_out, out_dtype)       # out tile (x2 buffers)
           + 2 * (_tile_bytes_2d(d_in, d_hid, compute_dtype)    # weights/biases (<=2 bufs)
                  + _tile_bytes_2d(d_hid, d_out, compute_dtype)
                  + _tile_bytes_2d(1, d_hid, jnp.float32)
                  + _tile_bytes_2d(1, d_out, jnp.float32)))
    vmem_limit = int(min(max(2 * est + (4 << 20), 16 << 20), 128 << 20))

    cbytes = jnp.dtype(compute_dtype).itemsize
    cost = pl.CostEstimate(
        flops=2 * N * (d_in * d_hid + d_hid * d_out),
        transcendentals=0,
        bytes_accessed=(x_c.size * cbytes + w1_c.size * cbytes + w2_c.size * cbytes
                        + b1_c.size * 4 + b2_c.size * 4
                        + N * d_out * jnp.dtype(out_dtype).itemsize),
    )

    def run(single_buffer_weights: bool):
        if single_buffer_weights:
            # Grid-invariant operands: double-buffering them is pure VMEM waste.
            resident = dict(pipeline_mode=pl.Buffered(1))
        else:
            resident = {}
        return pl.pallas_call(
            compose_kernel,
            out_shape=jax.ShapeDtypeStruct((N, d_out), out_dtype),
            grid_spec=pltpu.PrefetchScalarGridSpec(
                num_scalar_prefetch=0,
                grid=grid,
                in_specs=[
                    pl.BlockSpec((tile_m, d_in), lambda i: (i, 0)),              # x row tile
                    pl.BlockSpec((d_in, d_hid), lambda i: (0, 0), **resident),   # W1 resident
                    pl.BlockSpec((1, d_hid), lambda i: (0, 0), **resident),      # b1 resident
                    pl.BlockSpec((d_hid, d_out), lambda i: (0, 0), **resident),  # W2 resident
                    pl.BlockSpec((1, d_out), lambda i: (0, 0), **resident),      # b2 resident
                ],
                out_specs=pl.BlockSpec((tile_m, d_out), lambda i: (i, 0)),
            ),
            compiler_params=pltpu.CompilerParams(
                dimension_semantics=("parallel",),  # row tiles shard across TCs
                vmem_limit_bytes=vmem_limit,
            ),
            cost_estimate=cost,
        )(x_c, w1_c, b1_c, w2_c, b2_c)

    # TODO(synk): at production widths (d ~ 4K+) on v7x (64 MiB VMEM), add a K
    # grid axis ("arbitrary", f32 accumulator scratch) or stream weight tiles
    # with pltpu.emit_pipeline instead of keeping both weights fully resident;
    # fp8 weights are a further option on v7x.
    try:
        return run(single_buffer_weights=True)
    except Exception:
        # Some JAX builds reject pl.Buffered(1) on pallas_call BlockSpecs; fall
        # back to default (double) buffering -- correctness is identical.
        return run(single_buffer_weights=False)


if __name__ == "__main__":
    key = jax.random.PRNGKey(0)
    k_x, k_w1, k_b1, k_w2, k_b2 = jax.random.split(key, 5)

    # Small shapes consistent with MessagePassing feature maps; N deliberately
    # NOT a multiple of the row tile so the masked partial-block path is hit.
    N, d_in, d_hid, d_out = 200, 32, 64, 16

    x = jax.random.normal(k_x, (N, d_in), dtype=jnp.float32)
    # Deterministic parameter init (synthetic; no checkpoint load).
    w1 = jax.random.normal(k_w1, (d_in, d_hid), dtype=jnp.float32) / jnp.sqrt(d_in)
    b1 = jax.random.normal(k_b1, (1, d_hid), dtype=jnp.float32) * 0.1
    w2 = jax.random.normal(k_w2, (d_hid, d_out), dtype=jnp.float32) / jnp.sqrt(d_hid)
    b2 = jax.random.normal(k_b2, (1, d_out), dtype=jnp.float32) * 0.1

    # Default tile_m=512 is auto-clamped to 104 here so the grid has 2 steps
    # (feeds both v7x TensorCores); at production N the full 512 tile is used.
    out = compose_forward(x, w1, b1, w2, b2)
    out = jax.block_until_ready(out)

    # Pure-JAX reference of Compose(first, second).forward(x)
    ref = (x @ w1 + b1) @ w2 + b2
    assert out.shape == (N, d_out)
    # bf16 operands with f32 accumulation -> loosened tolerance vs f32 ref.
    assert jnp.allclose(out, ref, atol=5e-2, rtol=5e-2), float(
        jnp.max(jnp.abs(out - ref)))

    print("KERNEL_OK")
</pallas_src>

<mosaic_0001>
module attributes {stable_mosaic.version = 11 : i64} {
  func.func @compose_kernel(%arg0: i32, %arg1: memref<104x32xbf16, #tpu.memory_space<vmem>>, %arg2: memref<32x64xbf16, #tpu.memory_space<vmem>>, %arg3: memref<1x64xf32, #tpu.memory_space<vmem>>, %arg4: memref<64x16xbf16, #tpu.memory_space<vmem>>, %arg5: memref<1x16xf32, #tpu.memory_space<vmem>>, %arg6: memref<104x16xf32, #tpu.memory_space<vmem>>) attributes {dimension_semantics = [#tpu.dimension_semantics<parallel>], iteration_bounds = array<i64: 2>, scalar_prefetch = 0 : i64, scratch_operands = 0 : i64, tpu.core_type = #tpu.core_type<tc>, window_params = [{transform_indices = @transform_0, window_bounds = array<i64: 104, 32>}, {pipeline_mode = #tpu.pipeline_mode<synchronous>, transform_indices = @transform_1, window_bounds = array<i64: 32, 64>}, {pipeline_mode = #tpu.pipeline_mode<synchronous>, transform_indices = @transform_2, window_bounds = array<i64: 1, 64>}, {pipeline_mode = #tpu.pipeline_mode<synchronous>, transform_indices = @transform_3, window_bounds = array<i64: 64, 16>}, {pipeline_mode = #tpu.pipeline_mode<synchronous>, transform_indices = @transform_4, window_bounds = array<i64: 1, 16>}, {transform_indices = @transform_5, window_bounds = array<i64: 104, 16>}]} {
    %c0 = arith.constant 0 : index
    %c0_0 = arith.constant 0 : index
    %0 = vector.load %arg1[%c0, %c0_0] : memref<104x32xbf16, #tpu.memory_space<vmem>>, vector<104x32xbf16>
    %c0_1 = arith.constant 0 : index
    %c0_2 = arith.constant 0 : index
    %1 = vector.load %arg2[%c0_1, %c0_2] : memref<32x64xbf16, #tpu.memory_space<vmem>>, vector<32x64xbf16>
    %cst = arith.constant dense<0.000000e+00> : vector<104x64xf32>
    %2 = tpu.matmul %0, %1, %cst {dimension_numbers = #tpu.dot_dimension_numbers<[1], [0], [0], [1], [0, 0, 1, 1], [], []>} : vector<104x32xbf16>, vector<32x64xbf16>, vector<104x64xf32> -> vector<104x64xf32>
    %c0_3 = arith.constant 0 : index
    %c0_4 = arith.constant 0 : index
    %3 = vector.load %arg3[%c0_3, %c0_4] : memref<1x64xf32, #tpu.memory_space<vmem>>, vector<1x64xf32>
    %4 = vector.broadcast %3 : vector<1x64xf32> to vector<104x64xf32>
    %5 = arith.addf %2, %4 : vector<104x64xf32>
    %6 = arith.truncf %5 : vector<104x64xf32> to vector<104x64xbf16>
    %c0_5 = arith.constant 0 : index
    %c0_6 = arith.constant 0 : index
    %7 = vector.load %arg4[%c0_5, %c0_6] : memref<64x16xbf16, #tpu.memory_space<vmem>>, vector<64x16xbf16>
    %cst_7 = arith.constant dense<0.000000e+00> : vector<104x16xf32>
    %8 = tpu.matmul %6, %7, %cst_7 {dimension_numbers = #tpu.dot_dimension_numbers<[1], [0], [0], [1], [0, 0, 1, 1], [], []>} : vector<104x64xbf16>, vector<64x16xbf16>, vector<104x16xf32> -> vector<104x16xf32>
    %c0_8 = arith.constant 0 : index
    %c0_9 = arith.constant 0 : index
    %9 = vector.load %arg5[%c0_8, %c0_9] : memref<1x16xf32, #tpu.memory_space<vmem>>, vector<1x16xf32>
    %10 = vector.broadcast %9 : vector<1x16xf32> to vector<104x16xf32>
    %11 = arith.addf %8, %10 : vector<104x16xf32>
    %c0_10 = arith.constant 0 : index
    %c0_11 = arith.constant 0 : index
    %12 = vector.load %arg6[%c0_10, %c0_11] : memref<104x16xf32, #tpu.memory_space<vmem>>, vector<104x16xf32>
    tpu.vector_store %arg6[%c0_10, %c0_11], %11 {strides = array<i32>} : memref<104x16xf32, #tpu.memory_space<vmem>>, vector<104x16xf32>,
    return
  }
  func.func @transform_0(%arg0: i32) -> (i32, i32) {
    %c0_i32 = arith.constant 0 : i32
    %c0_i32_0 = arith.constant 0 : i32
    return %arg0, %c0_i32 : i32, i32
  }
  func.func @transform_1(%arg0: i32) -> (i32, i32) {
    %c0_i32 = arith.constant 0 : i32
    %c0_i32_0 = arith.constant 0 : i32
    %c0_i32_1 = arith.constant 0 : i32
    return %c0_i32, %c0_i32_0 : i32, i32
  }
  func.func @transform_2(%arg0: i32) -> (i32, i32) {
    %c0_i32 = arith.constant 0 : i32
    %c0_i32_0 = arith.constant 0 : i32
    %c0_i32_1 = arith.constant 0 : i32
    return %c0_i32, %c0_i32_0 : i32, i32
  }
  func.func @transform_3(%arg0: i32) -> (i32, i32) {
    %c0_i32 = arith.constant 0 : i32
    %c0_i32_0 = arith.constant 0 : i32
    %c0_i32_1 = arith.constant 0 : i32
    return %c0_i32, %c0_i32_0 : i32, i32
  }
  func.func @transform_4(%arg0: i32) -> (i32, i32) {
    %c0_i32 = arith.constant 0 : i32
    %c0_i32_0 = arith.constant 0 : i32
    %c0_i32_1 = arith.constant 0 : i32
    return %c0_i32, %c0_i32_0 : i32, i32
  }
  func.func @transform_5(%arg0: i32) -> (i32, i32) {
    %c0_i32 = arith.constant 0 : i32
    %c0_i32_0 = arith.constant 0 : i32
    return %arg0, %c0_i32 : i32, i32
  }
}

module attributes {stable_mosaic.version = 11 : i64} {
  func.func @compose_kernel(%arg0: i32, %arg1: memref<104x32xbf16, #tpu.memory_space<vmem>>, %arg2: memref<32x64xbf16, #tpu.memory_space<vmem>>, %arg3: memref<1x64xf32, #tpu.memory_space<vmem>>, %arg4: memref<64x16xbf16, #tpu.memory_space<vmem>>, %arg5: memref<1x16xf32, #tpu.memory_space<vmem>>, %arg6: memref<104x16xf32, #tpu.memory_space<vmem>>) attributes {dimension_semantics = [#tpu.dimension_semantics<parallel>], iteration_bounds = array<i64: 2>, scalar_prefetch = 0 : i64, scratch_operands = 0 : i64, tpu.core_type = #tpu.core_type<tc>, window_params = [{transform_indices = @transform_0, window_bounds = array<i64: 104, 32>}, {pipeline_mode = #tpu.pipeline_mode<synchronous>, transform_indices = @transform_1, window_bounds = array<i64: 32, 64>}, {pipeline_mode = #tpu.pipeline_mode<synchronous>, transform_indices = @transform_2, window_bounds = array<i64: 1, 64>}, {pipeline_mode = #tpu.pipeline_mode<synchronous>, transform_indices = @transform_3, window_bounds = array<i64: 64, 16>}, {pipeline_mode = #tpu.pipeline_mode<synchronous>, transform_indices = @transform_4, window_bounds = array<i64: 1, 16>}, {transform_indices = @transform_5, window_bounds = array<i64: 104, 16>}]} {
    %c0 = arith.constant 0 : index
    %c0_0 = arith.constant 0 : index
    %0 = vector.load %arg1[%c0, %c0_0] : memref<104x32xbf16, #tpu.memory_space<vmem>>, vector<104x32xbf16>
    %c0_1 = arith.constant 0 : index
    %c0_2 = arith.constant 0 : index
    %1 = vector.load %arg2[%c0_1, %c0_2] : memref<32x64xbf16, #tpu.memory_space<vmem>>, vector<32x64xbf16>
    %cst = arith.constant dense<0.000000e+00> : vector<104x64xf32>
    %2 = tpu.matmul %0, %1, %cst {dimension_numbers = #tpu.dot_dimension_numbers<[1], [0], [0], [1], [0, 0, 1, 1], [], []>} : vector<104x32xbf16>, vector<32x64xbf16>, vector<104x64xf32> -> vector<104x64xf32>
    %c0_3 = arith.constant 0 : index
    %c0_4 = arith.constant 0 : index
    %3 = vector.load %arg3[%c0_3, %c0_4] : memref<1x64xf32, #tpu.memory_space<vmem>>, vector<1x64xf32>
    %4 = vector.broadcast %3 : vector<1x64xf32> to vector<104x64xf32>
    %5 = arith.addf %2, %4 : vector<104x64xf32>
    %6 = arith.truncf %5 : vector<104x64xf32> to vector<104x64xbf16>
    %c0_5 = arith.constant 0 : index
    %c0_6 = arith.constant 0 : index
    %7 = vector.load %arg4[%c0_5, %c0_6] : memref<64x16xbf16, #tpu.memory_space<vmem>>, vector<64x16xbf16>
    %cst_7 = arith.constant dense<0.000000e+00> : vector<104x16xf32>
    %8 = tpu.matmul %6, %7, %cst_7 {dimension_numbers = #tpu.dot_dimension_numbers<[1], [0], [0], [1], [0, 0, 1, 1], [], []>} : vector<104x64xbf16>, vector<64x16xbf16>, vector<104x16xf32> -> vector<104x16xf32>
    %c0_8 = arith.constant 0 : index
    %c0_9 = arith.constant 0 : index
    %9 = vector.load %arg5[%c0_8, %c0_9] : memref<1x16xf32, #tpu.memory_space<vmem>>, vector<1x16xf32>
    %10 = vector.broadcast %9 : vector<1x16xf32> to vector<104x16xf32>
    %11 = arith.addf %8, %10 : vector<104x16xf32>
    %c0_10 = arith.constant 0 : index
    %c0_11 = arith.constant 0 : index
    %12 = vector.load %arg6[%c0_10, %c0_11] : memref<104x16xf32, #tpu.memory_space<vmem>>, vector<104x16xf32>
    tpu.vector_store %arg6[%c0_10, %c0_11], %11 {strides = array<i32>} : memref<104x16xf32, #tpu.memory_space<vmem>>, vector<104x16xf32>,
    return
  }
  func.func @transform_0(%arg0: i32) -> (i32, i32) {
    %c0_i32 = arith.constant 0 : i32
    %c0_i32_0 = arith.constant 0 : i32
    return %arg0, %c0_i32 : i32, i32
  }
  func.func @transform_1(%arg0: i32) -> (i32, i32) {
    %c0_i32 = arith.constant 0 : i32
    %c0_i32_0 = arith.constant 0 : i32
    %c0_i32_1 = arith.constant 0 : i32
    return %c0_i32, %c0_i32_0 : i32, i32
  }
  func.func @transform_2(%arg0: i32) -> (i32, i32) {
    %c0_i32 = arith.constant 0 : i32
    %c0_i32_0 = arith.constant 0 : i32
    %c0_i32_1 = arith.constant 0 : i32
    return %c0_i32, %c0_i32_0 : i32, i32
  }
  func.func @transform_3(%arg0: i32) -> (i32, i32) {
    %c0_i32 = arith.constant 0 : i32
    %c0_i32_0 = arith.constant 0 : i32
    %c0_i32_1 = arith.constant 0 : i32
    return %c0_i32, %c0_i32_0 : i32, i32
  }
  func.func @transform_4(%arg0: i32) -> (i32, i32) {
    %c0_i32 = arith.constant 0 : i32
    %c0_i32_0 = arith.constant 0 : i32
    %c0_i32_1 = arith.constant 0 : i32
    return %c0_i32, %c0_i32_0 : i32, i32
  }
  func.func @transform_5(%arg0: i32) -> (i32, i32) {
    %c0_i32 = arith.constant 0 : i32
    %c0_i32_0 = arith.constant 0 : i32
    return %arg0, %c0_i32 : i32, i32
  }
}

</mosaic_0001>

<llo_original>
// kernel: tpu_custom_call.1
$region0: #{tpu_custom_call.1}
  #allocation0 [shape = 'u32[]', space=smem, size = 0x4, offset = 0x4, fixed_abs, tag = 'smem constant byte address 0x4 - core index']
  #allocation1 [shape = 'u32[144,128]{1,0:T(1,128)}', space=vmem, size = 0x12000, scoped, tag = 'internal scratch']
  %s0 = inlined_call_operand.vmem [shape: bf16[200,32], index: 0, kind: input, shape index: {}]
  %s1 = inlined_call_operand.vmem [shape: bf16[32,64], index: 1, kind: input, shape index: {}]
  %s2 = inlined_call_operand.vmem [shape: f32[1,64], index: 2, kind: input, shape index: {}]
  %s3 = inlined_call_operand.vmem [shape: bf16[64,16], index: 3, kind: input, shape index: {}]
  %s4 = inlined_call_operand.vmem [shape: f32[1,16], index: 4, kind: input, shape index: {}]
  %s5 = inlined_call_operand.vmem [shape: f32[200,16], index: 5, kind: output, shape index: {}]
  %s6 = sld [smem:[#allocation0]]
  $region101: #{tpu_custom_call.1} parent=0
    _
  %s8 = ssub.s32 1, %s6
  %s9 = scalar_select 0, %s8, %s6
  $region1: #{tpu_custom_call.1} parent=0
    #allocation2 [shape = 'u8[106496]{0}', space=vmem, size = 0x1a000, scoped, tag = 'output window, operand 0']
    loop: start=0, step=1, limit=4
    $region2: #{tpu_custom_call.1} parent=1 // loop_pre_header
      _
    $region3: #{tpu_custom_call.1} parent=1 // loop_header
      %s11 = sphi 0, %s15
      %p12 = scmp.ge.s32.totalorder %s11, 4
      %s21 = sphi 0, %s23
      %s24 = sphi 0, %s21
      %s25 = sphi 0, %s24
      %s41 = sphi 0, %s25
      %s45 = sphi 0, %s45
      %s47 = sphi 0, %s45
      %s48 = sphi 0, %s47
      %s62 = sphi 0, %s48
      %s66 = sphi 0, %s66
      %s68 = sphi 0, %s66
      %s69 = sphi 0, %s68
      %s83 = sphi 0, %s69
      %s87 = sphi 0, %s87
      %s89 = sphi 0, %s87
      %s90 = sphi 0, %s89
      %s104 = sphi 0, %s90
      %s108 = sphi 0, %s108
      %s110 = sphi 0, %s108
      %s111 = sphi 0, %s110
      %s125 = sphi 0, %s111
      %s131 = sphi 0, %s133
      %s134 = sphi 0, %s131
      %s135 = sphi 0, %s134
      %s151 = sphi 0, %s135
    $region4: #{tpu_custom_call.1} parent=1 // loop_header_branch
      %14 = sbr.rel (%p12) target = $region8
    $region5: #{tpu_custom_call.1} parent=1 // loop_body
      %s16 = ssub.s32 %s11, 1
      %s17 = ssub.s32 %s11, 2
      %s18 = sadd.s32 %s11, 1
      %s19 = ssub.s32 %s11, %s18
      %p20 = scmp.eq.s32.totalorder %s19, 0
      %s22 = sadd.s32 %s21, 1
      %s23 = scalar_select %p20, %s21, %s22
      %p26 = pneg %p20
      %p27 = scmp.eq.s32.totalorder %s11, 1
      %p28 = por %p26, %p27
      %p29 = scmp.ne.s32.totalorder %s21, %s24
      %p30 = scmp.eq.s32.totalorder %s11, 0
      %p31 = por %p29, %p30
      %p32 = scmp.ne.s32.totalorder %s21, %s24
      %p33 = scmp.eq.s32.totalorder %s16, 1
      %p34 = por %p32, %p33
      %p35 = scmp.ne.s32.totalorder %s24, %s25
      %p36 = scmp.eq.s32.totalorder %s16, 0
      %p37 = por %p35, %p36
      %p38 = scmp.ne.s32.totalorder %s24, %s25
      %p39 = scmp.eq.s32.totalorder %s17, 1
      %p40 = por %p38, %p39
      %p42 = scmp.ne.s32.totalorder %s25, %s41
      %p43 = scmp.eq.s32.totalorder %s17, 0
      %p44 = por %p42, %p43
      %s46 = sadd.s32 %s45, 1
      %p49 = scmp.eq.s32.totalorder %s11, 1
      %p50 = scmp.ne.s32.totalorder %s45, %s47
      %p51 = scmp.eq.s32.totalorder %s11, 0
      %p52 = por %p50, %p51
      %p53 = scmp.ne.s32.totalorder %s45, %s47
      %p54 = scmp.eq.s32.totalorder %s16, 1
      %p55 = por %p53, %p54
      %p56 = scmp.ne.s32.totalorder %s47, %s48
      %p57 = scmp.eq.s32.totalorder %s16, 0
      %p58 = por %p56, %p57
      %p59 = scmp.ne.s32.totalorder %s47, %s48
      %p60 = scmp.eq.s32.totalorder %s17, 1
      %p61 = por %p59, %p60
      %p63 = scmp.ne.s32.totalorder %s48, %s62
      %p64 = scmp.eq.s32.totalorder %s17, 0
      %p65 = por %p63, %p64
      %s67 = sadd.s32 %s66, 1
      %p70 = scmp.eq.s32.totalorder %s11, 1
      %p71 = scmp.ne.s32.totalorder %s66, %s68
      %p72 = scmp.eq.s32.totalorder %s11, 0
      %p73 = por %p71, %p72
      %p74 = scmp.ne.s32.totalorder %s66, %s68
      %p75 = scmp.eq.s32.totalorder %s16, 1
      %p76 = por %p74, %p75
      %p77 = scmp.ne.s32.totalorder %s68, %s69
      %p78 = scmp.eq.s32.totalorder %s16, 0
      %p79 = por %p77, %p78
      %p80 = scmp.ne.s32.totalorder %s68, %s69
      %p81 = scmp.eq.s32.totalorder %s17, 1
      %p82 = por %p80, %p81
      %p84 = scmp.ne.s32.totalorder %s69, %s83
      %p85 = scmp.eq.s32.totalorder %s17, 0
      %p86 = por %p84, %p85
      %s88 = sadd.s32 %s87, 1
      %p91 = scmp.eq.s32.totalorder %s11, 1
      %p92 = scmp.ne.s32.totalorder %s87, %s89
      %p93 = scmp.eq.s32.totalorder %s11, 0
      %p94 = por %p92, %p93
      %p95 = scmp.ne.s32.totalorder %s87, %s89
      %p96 = scmp.eq.s32.totalorder %s16, 1
      %p97 = por %p95, %p96
      %p98 = scmp.ne.s32.totalorder %s89, %s90
      %p99 = scmp.eq.s32.totalorder %s16, 0
      %p100 = por %p98, %p99
      %p101 = scmp.ne.s32.totalorder %s89, %s90
      %p102 = scmp.eq.s32.totalorder %s17, 1
      %p103 = por %p101, %p102
      %p105 = scmp.ne.s32.totalorder %s90, %s104
      %p106 = scmp.eq.s32.totalorder %s17, 0
      %p107 = por %p105, %p106
      %s109 = sadd.s32 %s108, 1
      %p112 = scmp.eq.s32.totalorder %s11, 1
      %p113 = scmp.ne.s32.totalorder %s108, %s110
      %p114 = scmp.eq.s32.totalorder %s11, 0
      %p115 = por %p113, %p114
      %p116 = scmp.ne.s32.totalorder %s108, %s110
      %p117 = scmp.eq.s32.totalorder %s16, 1
      %p118 = por %p116, %p117
      %p119 = scmp.ne.s32.totalorder %s110, %s111
      %p120 = scmp.eq.s32.totalorder %s16, 0
      %p121 = por %p119, %p120
      %p122 = scmp.ne.s32.totalorder %s110, %s111
      %p123 = scmp.eq.s32.totalorder %s17, 1
      %p124 = por %p122, %p123
      %p126 = scmp.ne.s32.totalorder %s111, %s125
      %p127 = scmp.eq.s32.totalorder %s17, 0
      %p128 = por %p126, %p127
      %s129 = ssub.s32 %s11, %s18
      %p130 = scmp.eq.s32.totalorder %s129, 0
      %s132 = sadd.s32 %s131, 1
      %s133 = scalar_select %p130, %s131, %s132
      %p136 = pneg %p130
      %p137 = scmp.eq.s32.totalorder %s11, 1
      %p138 = por %p136, %p137
      %p139 = scmp.ne.s32.totalorder %s131, %s134
      %p140 = scmp.eq.s32.totalorder %s11, 0
      %p141 = por %p139, %p140
      %p142 = scmp.ne.s32.totalorder %s131, %s134
      %p143 = scmp.eq.s32.totalorder %s16, 1
      %p144 = por %p142, %p143
      %p145 = scmp.ne.s32.totalorder %s134, %s135
      %p146 = scmp.eq.s32.totalorder %s16, 0
      %p147 = por %p145, %p146
      %p148 = scmp.ne.s32.totalorder %s134, %s135
      %p149 = scmp.eq.s32.totalorder %s17, 1
      %p150 = por %p148, %p149
      %p152 = scmp.ne.s32.totalorder %s135, %s151
      %p153 = scmp.eq.s32.totalorder %s17, 0
      %p154 = por %p152, %p153
      %p155 = scmp.le.s32.totalorder 1, %s11
      %p156 = scmp.lt.s32.totalorder %s11, 3
      %p157 = pnand %p155, %p156
      %p158 = pneg %p157
      // Predicated region
      $region9: #{tpu_custom_call.1} parent=5 // pred_check
        _
      $region10: #{tpu_custom_call.1} parent=5 // pred_check_branch
        %160 = sbr.rel (%p157) target = $region12
      $region11: #{tpu_custom_call.1} parent=5 // pred_region
        %s161 = ssub.s32 %s11, 1
        // Predicated region
        $region13: #{tpu_custom_call.1} parent=11 // pred_check
          %p162 = pneg %p58
        $region14: #{tpu_custom_call.1} parent=11 // pred_check_branch
          %164 = sbr.rel (%p162) target = $region16
        $region15: #{tpu_custom_call.1} parent=11 // pred_region
          _
        $region16: #{tpu_custom_call.1} parent=11 // pred_fallthru
          _
        // Predicated region
        $region17: #{tpu_custom_call.1} parent=11 // pred_check
          %p165 = pneg %p79
        $region18: #{tpu_custom_call.1} parent=11 // pred_check_branch
          %167 = sbr.rel (%p165) target = $region20
        $region19: #{tpu_custom_call.1} parent=11 // pred_region
          _
        $region20: #{tpu_custom_call.1} parent=11 // pred_fallthru
          _
        // Predicated region
        $region21: #{tpu_custom_call.1} parent=11 // pred_check
          %p168 = pneg %p100
        $region22: #{tpu_custom_call.1} parent=11 // pred_check_branch
          %170 = sbr.rel (%p168) target = $region24
        $region23: #{tpu_custom_call.1} parent=11 // pred_region
          _
        $region24: #{tpu_custom_call.1} parent=11 // pred_fallthru
          _
        // Predicated region
        $region25: #{tpu_custom_call.1} parent=11 // pred_check
          %p171 = pneg %p121
        $region26: #{tpu_custom_call.1} parent=11 // pred_check_branch
          %173 = sbr.rel (%p171) target = $region28
        $region27: #{tpu_custom_call.1} parent=11 // pred_region
          _
        $region28: #{tpu_custom_call.1} parent=11 // pred_fallthru
          _
      $region12: #{tpu_custom_call.1} parent=5 // pred_fallthru
        _
      %p174 = scmp.lt.s32.totalorder %s11, 2
      // Predicated region
      $region29: #{tpu_custom_call.1} parent=5 // pred_check
        %p175 = pneg %p174
      $region30: #{tpu_custom_call.1} parent=5 // pred_check_branch
        %177 = sbr.rel (%p175) target = $region32
      $region31: #{tpu_custom_call.1} parent=5 // pred_region
        // Predicated region
        $region33: #{tpu_custom_call.1} parent=31 // pred_check
          %p178 = pneg %p31
        $region34: #{tpu_custom_call.1} parent=31 // pred_check_branch
          %180 = sbr.rel (%p178) target = $region36
        $region35: #{tpu_custom_call.1} parent=31 // pred_region
          %s181 = smul.u32 13, %s11
          %s182 = ssub.s32 25, %s181
          %p183 = scmp.lt.s32.totalorder %s182, 13
          %s184 = scalar_select %p183, %s182, 13
          %s185 = smul.u32 64, %s184
          %p186 = scmp.lt.s32.totalorder %s181, 24
          %s187 = scalar_select %p186, %s181, 24
          %s188 = smul.addr %s187, 4
          %s189 = scalar_lea.vmem %s0, %s188
          %s190 = smul.u32 13, %s11
          %s191 = ssub.s32 25, %s190
          %p192 = scmp.lt.s32.totalorder %s191, 13
          %s193 = scalar_select %p192, %s191, 13
          %s194 = smul.u32 64, %s193
        $region36: #{tpu_custom_call.1} parent=31 // pred_fallthru
          _
      $region32: #{tpu_custom_call.1} parent=5 // pred_fallthru
        _
      %p195 = scmp.le.s32.totalorder 1, %s11
      %p196 = scmp.lt.s32.totalorder %s11, 3
      %p197 = pnand %p195, %p196
      %p198 = pneg %p197
      // Predicated region
      $region37: #{tpu_custom_call.1} parent=5 // pred_check
        _
      $region38: #{tpu_custom_call.1} parent=5 // pred_check_branch
        %200 = sbr.rel (%p197) target = $region40
      $region39: #{tpu_custom_call.1} parent=5 // pred_region
        %s201 = ssub.s32 %s11, 1
        %s202 = smul.u32 13, %s16
        %s203 = ssub.s32 25, %s202
        %p204 = scmp.lt.s32.totalorder %s203, 13
        %s205 = scalar_select %p204, %s203, 13
        %s206 = smul.u32 64, %s205
        %p207 = scmp.lt.s32.totalorder %s202, 24
        %s208 = scalar_select %p207, %s202, 24
        %s209 = smul.addr %s208, 4
        %s210 = scalar_lea.vmem %s0, %s209
        %p211 = pneg %p37
        %p212 = pneg %p34
        %p213 = pneg %p58
        %p214 = pneg %p55
        %p215 = pneg %p79
        %p216 = pneg %p76
        %p217 = pneg %p100
        %p218 = pneg %p97
        %p219 = pneg %p121
        %p220 = pneg %p118
        %p221 = pneg %p147
        %p222 = pneg %p144
        %s223 = sand.u32 %s134, 1
        %s224 = sand.u32 %s134, 1
        %s225 = smul.addr %s224, 104
        %s226 = scalar_lea.vmem [#allocation2], %s225
        %s227 = smul.u32 13, %s16
        %s228 = ssub.s32 25, %s227
        %p229 = scmp.lt.s32.totalorder %s228, 13
        %s230 = scalar_select %p229, %s228, 13
        %s231 = smul.u32 64, %s230
        %p232 = scmp.lt.s32.totalorder %s227, 24
        %s233 = scalar_select %p232, %s227, 24
        %s234 = smul.addr %s233, 4
        %s235 = scalar_lea.vmem %s0, %s234
        %s236 = smul.u32 13, %s16
        %s237 = ssub.s32 25, %s236
        %p238 = scmp.lt.s32.totalorder %s237, 13
        %s239 = scalar_select %p238, %s237, 13
        %s240 = smul.u32 64, %s239
        %s241 = smul.u32 13, %s16
        %s242 = ssub.s32 25, %s241
        %p243 = scmp.lt.s32.totalorder %s242, 13
        %s244 = scalar_select %p243, %s242, 13
        %s245 = smul.u32 128, %s244
        %v247 = vld [vmem:[%s235] sm:$0xf]
        %v248 = vld [vmem:[%s235 + $0x4] sm:$0xf]
        %v249 = vld [vmem:[%s235 + $0x8] sm:$0xf]
        %v250 = vld [vmem:[%s235 + $0xc] sm:$0xf]
        %v251 = vld [vmem:[%s235 + $0x10] sm:$0xf]
        %v252 = vld [vmem:[%s235 + $0x14] sm:$0xf]
        %v253 = vld [vmem:[%s235 + $0x18] sm:$0xf]
        %v254 = vld [vmem:[%s235 + $0x1c] sm:$0xf]
        %v255 = vld [vmem:[%s235 + $0x20] sm:$0xf]
        %v256 = vld [vmem:[%s235 + $0x24] sm:$0xf]
        %v257 = vld [vmem:[%s235 + $0x28] sm:$0xf]
        %v258 = vld [vmem:[%s235 + $0x2c] sm:$0xf]
        %v259 = vld [vmem:[%s235 + $0x30] sm:$0xf]
        %v260 = vld [vmem:[%s1] sm:$0xf]
        %v261 = vld [vmem:[%s1 + $0x4] sm:$0xf]
        %v262 = vld [vmem:[%s1 + $0x8] sm:$0xf]
        %v263 = vld [vmem:[%s1 + $0xc] sm:$0xf]
        %v264 = vld [vmem:[%s2] sm:$0x1]
        %v266 = vlaneseq
        %v267 = vshrl.u32 %v266, 7
        %v268 = vsub.s32 0, %v267
        %v269 = vrot.slane %v264, %v268
        %v284 = vunpack.c.l.b16 %v247
        %v285 = vunpack.c.l.b16 %v248
        %v286 = vunpack.c.l.b16 %v249
        %v287 = vunpack.c.l.b16 %v250
        %v288 = vunpack.c.l.b16 %v251
        %v289 = vunpack.c.l.b16 %v252
        %v290 = vunpack.c.l.b16 %v253
        %v291 = vunpack.c.l.b16 %v254
        %v292 = vunpack.c.l.b16 %v255
        %v293 = vunpack.c.l.b16 %v256
        %v294 = vunpack.c.l.b16 %v257
        %v295 = vunpack.c.l.b16 %v258
        %v296 = vunpack.c.l.b16 %v259
        %v297 = vpack.c.b16 %v285, %v284
        %v298 = vpack.c.b16 %v287, %v286
        %v299 = vpack.c.b16 %v289, %v288
        %v300 = vpack.c.b16 %v291, %v290
        %v301 = vpack.c.b16 %v293, %v292
        %v302 = vpack.c.b16 %v295, %v294
        %v303 = vpack.c.b16 %v296, %v296
        %v308 = vunpack.c.l.b16 %v260
        %v309 = vunpack.c.l.b16 %v261
        %v310 = vunpack.c.l.b16 %v262
        %v311 = vunpack.c.l.b16 %v263
        %v312 = vpack.c.b16 %v309, %v308
        %v313 = vpack.c.b16 %v311, %v310
        %vm316 = vcmask 261120
        %v318 = vsel %vm316, %v297, 0
        %v321 = vsel %vm316, %v298, 0
        %v324 = vsel %vm316, %v299, 0
        %v327 = vsel %vm316, %v300, 0
        %v330 = vsel %vm316, %v301, 0
        %v333 = vsel %vm316, %v302, 0
        %v336 = vsel %vm316, %v303, 0
        %338 = vmatprep.subr.bf16.mxu0 0
        %339 = vmatpush1.bf16.msra.mxu0 %v312
        %340 = vmatprep.subr.bf16.mxu0 0
        %341 = vmatpush1.bf16.msra.mxu0 %v313
        %342 = vmatprep.subr.bf16.mxu0 0
        %343 = vmatpush1.bf16.msra.mxu0 0
        %344 = vmatprep.subr.bf16.mxu0 0
        %345 = vmatpush1.bf16.msra.mxu0 0
        %346 = vmatprep.subr.bf16.mxu0 0
        %347 = vmatpush1.bf16.msra.mxu0 0
        %348 = vmatprep.subr.bf16.mxu0 0
        %349 = vmatpush1.bf16.msra.mxu0 0
        %350 = vmatprep.subr.bf16.mxu0 0
        %351 = vmatpush1.bf16.msra.mxu0 0
        %352 = vmatprep.subr.bf16.mxu0 0
        %353 = vmatpush1.bf16.msra.mxu0 0
        %354 = vmatprep.subr.bf16.mxu0 0
        %355 = vmatpush1.bf16.msra.mxu0 0
        %356 = vmatprep.subr.bf16.mxu0 0
        %357 = vmatpush1.bf16.msra.mxu0 0
        %358 = vmatprep.subr.bf16.mxu0 0
        %359 = vmatpush1.bf16.msra.mxu0 0
        %360 = vmatprep.subr.bf16.mxu0 0
        %361 = vmatpush1.bf16.msra.mxu0 0
        %362 = vmatprep.subr.bf16.mxu0 0
        %363 = vmatpush1.bf16.msra.mxu0 0
        %364 = vmatprep.subr.bf16.mxu0 0
        %365 = vmatpush1.bf16.msra.mxu0 0
        %366 = vmatprep.subr.bf16.mxu0 0
        %367 = vmatpush1.bf16.msra.mxu0 0
        %368 = vmatprep.subr.bf16.mxu0 0
        %369 = vmatpush1.bf16.msra.mxu0 0
        %370 = vmatprep.mubr.bf16.mxu0 0
        %371 = vmatmul.mubr.bf16.gmra.mrb[0].mxu0 %v318
        %v372 = vpop.f32.mrb[0].mxu0
        %v373 = vadd.f32 %v269, %v372
        %v374 = vpop.f32.mrb[0].mxu0
        %v375 = vpop.f32.mrb[0].mxu0
        %v376 = vadd.f32 %v269, %v375
        %v377 = vpop.f32.mrb[0].mxu0
        %378 = vmatprep.mubr.bf16.mxu0 0
        %379 = vmatmul.mubr.bf16.gmra.mrb[0].mxu0 %v321
        %v380 = vpop.f32.mrb[0].mxu0
        %v381 = vadd.f32 %v269, %v380
        %v382 = vpop.f32.mrb[0].mxu0
        %v383 = vpop.f32.mrb[0].mxu0
        %v384 = vadd.f32 %v269, %v383
        %v385 = vpop.f32.mrb[0].mxu0
        %386 = vmatprep.mubr.bf16.mxu0 0
        %387 = vmatmul.mubr.bf16.gmra.mrb[0].mxu0 %v324
        %v388 = vpop.f32.mrb[0].mxu0
        %v389 = vadd.f32 %v269, %v388
        %v390 = vpop.f32.mrb[0].mxu0
        %v391 = vpop.f32.mrb[0].mxu0
        %v392 = vadd.f32 %v269, %v391
        %v393 = vpop.f32.mrb[0].mxu0
        %394 = vmatprep.mubr.bf16.mxu0 0
        %395 = vmatmul.mubr.bf16.gmra.mrb[0].mxu0 %v327
        %v396 = vpop.f32.mrb[0].mxu0
        %v397 = vadd.f32 %v269, %v396
        %v398 = vpop.f32.mrb[0].mxu0
        %v399 = vpop.f32.mrb[0].mxu0
        %v400 = vadd.f32 %v269, %v399
        %v401 = vpop.f32.mrb[0].mxu0
        %402 = vmatprep.mubr.bf16.mxu0 0
        %403 = vmatmul.mubr.bf16.gmra.mrb[0].mxu0 %v330
        %v404 = vpop.f32.mrb[0].mxu0
        %v405 = vadd.f32 %v269, %v404
        %v406 = vpop.f32.mrb[0].mxu0
        %v407 = vpop.f32.mrb[0].mxu0
        %v408 = vadd.f32 %v269, %v407
        %v409 = vpop.f32.mrb[0].mxu0
        %410 = vmatprep.mubr.bf16.mxu0 0
        %411 = vmatmul.mubr.bf16.gmra.mrb[0].mxu0 %v333
        %v412 = vpop.f32.mrb[0].mxu0
        %v413 = vadd.f32 %v269, %v412
        %v414 = vpop.f32.mrb[0].mxu0
        %v415 = vpop.f32.mrb[0].mxu0
        %v416 = vadd.f32 %v269, %v415
        %v417 = vpop.f32.mrb[0].mxu0
        %418 = vmatprep.mubr.bf16.mxu0 0
        %419 = vmatmul.mubr.bf16.gmra.mrb[0].mxu0 %v336
        %v420 = vpop.f32.mrb[0].mxu0
        %v421 = vadd.f32 %v269, %v420
        %v422 = vpop.f32.mrb[0].mxu0
        %v423 = vpop.f32.mrb[0].mxu0
        %v424 = vpop.f32.mrb[0].mxu0
        %425 = vdwg.mxu0
        %v426 = vpack.c.bf16 %v376, %v373
        %v427 = vpack.c.bf16 %v384, %v381
        %v428 = vpack.c.bf16 %v392, %v389
        %v429 = vpack.c.bf16 %v400, %v397
        %v430 = vpack.c.bf16 %v408, %v405
        %v431 = vpack.c.bf16 %v416, %v413
        %v432 = vpack.c.bf16 %v421, %v421
        %v433 = vld [vmem:[%s3] sm:$0xf]
        %v434 = vld [vmem:[%s3 + $0x4] sm:$0xf]
        %v435 = vld [vmem:[%s3 + $0x8] sm:$0xf]
        %v436 = vld [vmem:[%s3 + $0xc] sm:$0xf]
        %v437 = vld [vmem:[%s3 + $0x10] sm:$0xf]
        %v438 = vld [vmem:[%s3 + $0x14] sm:$0xf]
        %v439 = vld [vmem:[%s3 + $0x18] sm:$0xf]
        %v440 = vld [vmem:[%s3 + $0x1c] sm:$0xf]
        %v441 = vld [vmem:[%s4] sm:$0x1]
        %v443 = vlaneseq
        %v444 = vshrl.u32 %v443, 7
        %v445 = vsub.s32 0, %v444
        %v446 = vrot.slane %v441, %v445
        %v456 = vunpack.c.l.b16 %v433
        %v457 = vunpack.c.l.b16 %v434
        %v458 = vunpack.c.l.b16 %v435
        %v459 = vunpack.c.l.b16 %v436
        %v460 = vunpack.c.l.b16 %v437
        %v461 = vunpack.c.l.b16 %v438
        %v462 = vunpack.c.l.b16 %v439
        %v463 = vunpack.c.l.b16 %v440
        %v464 = vpack.c.b16 %v457, %v456
        %v465 = vpack.c.b16 %v459, %v458
        %v466 = vpack.c.b16 %v461, %v460
        %v467 = vpack.c.b16 %v463, %v462
        %vm472 = vcmask 523264
        %v474 = vsel %vm472, %v426, 0
        %v477 = vsel %vm472, %v427, 0
        %v480 = vsel %vm472, %v428, 0
        %v483 = vsel %vm472, %v429, 0
        %v486 = vsel %vm472, %v430, 0
        %v489 = vsel %vm472, %v431, 0
        %v492 = vsel %vm472, %v432, 0
        %494 = vmatprep.subr.bf16.mxu0 0
        %495 = vmatpush1.bf16.msra.mxu0 %v464
        %496 = vmatprep.subr.bf16.mxu0 0
        %497 = vmatpush1.bf16.msra.mxu0 %v465
        %498 = vmatprep.subr.bf16.mxu0 0
        %499 = vmatpush1.bf16.msra.mxu0 %v466
        %500 = vmatprep.subr.bf16.mxu0 0
        %501 = vmatpush1.bf16.msra.mxu0 %v467
        %502 = vmatprep.subr.bf16.mxu0 0
        %503 = vmatpush1.bf16.msra.mxu0 0
        %504 = vmatprep.subr.bf16.mxu0 0
        %505 = vmatpush1.bf16.msra.mxu0 0
        %506 = vmatprep.subr.bf16.mxu0 0
        %507 = vmatpush1.bf16.msra.mxu0 0
        %508 = vmatprep.subr.bf16.mxu0 0
        %509 = vmatpush1.bf16.msra.mxu0 0
        %510 = vmatprep.subr.bf16.mxu0 0
        %511 = vmatpush1.bf16.msra.mxu0 0
        %512 = vmatprep.subr.bf16.mxu0 0
        %513 = vmatpush1.bf16.msra.mxu0 0
        %514 = vmatprep.subr.bf16.mxu0 0
        %515 = vmatpush1.bf16.msra.mxu0 0
        %516 = vmatprep.subr.bf16.mxu0 0
        %517 = vmatpush1.bf16.msra.mxu0 0
        %518 = vmatprep.subr.bf16.mxu0 0
        %519 = vmatpush1.bf16.msra.mxu0 0
        %520 = vmatprep.subr.bf16.mxu0 0
        %521 = vmatpush1.bf16.msra.mxu0 0
        %522 = vmatprep.subr.bf16.mxu0 0
        %523 = vmatpush1.bf16.msra.mxu0 0
        %524 = vmatprep.subr.bf16.mxu0 0
        %525 = vmatpush1.bf16.msra.mxu0 0
        %526 = vmatprep.mubr.bf16.mxu0 0
        %527 = vmatmul.mubr.bf16.gmra.mrb[0].mxu0 %v474
        %v528 = vpop.f32.mrb[0].mxu0
        %v529 = vadd.f32 %v446, %v528
        %v530 = vpop.f32.mrb[0].mxu0
        %v531 = vpop.f32.mrb[0].mxu0
        %v532 = vadd.f32 %v446, %v531
        %v533 = vpop.f32.mrb[0].mxu0
        %534 = vmatprep.mubr.bf16.mxu0 0
        %535 = vmatmul.mubr.bf16.gmra.mrb[0].mxu0 %v477
        %v536 = vpop.f32.mrb[0].mxu0
        %v537 = vadd.f32 %v446, %v536
        %v538 = vpop.f32.mrb[0].mxu0
        %v539 = vpop.f32.mrb[0].mxu0
        %v540 = vadd.f32 %v446, %v539
        %v541 = vpop.f32.mrb[0].mxu0
        %542 = vmatprep.mubr.bf16.mxu0 0
        %543 = vmatmul.mubr.bf16.gmra.mrb[0].mxu0 %v480
        %v544 = vpop.f32.mrb[0].mxu0
        %v545 = vadd.f32 %v446, %v544
        %v546 = vpop.f32.mrb[0].mxu0
        %v547 = vpop.f32.mrb[0].mxu0
        %v548 = vadd.f32 %v446, %v547
        %v549 = vpop.f32.mrb[0].mxu0
        %550 = vmatprep.mubr.bf16.mxu0 0
        %551 = vmatmul.mubr.bf16.gmra.mrb[0].mxu0 %v483
        %v552 = vpop.f32.mrb[0].mxu0
        %v553 = vadd.f32 %v446, %v552
        %v554 = vpop.f32.mrb[0].mxu0
        %v555 = vpop.f32.mrb[0].mxu0
        %v556 = vadd.f32 %v446, %v555
        %v557 = vpop.f32.mrb[0].mxu0
        %558 = vmatprep.mubr.bf16.mxu0 0
        %559 = vmatmul.mubr.bf16.gmra.mrb[0].mxu0 %v486
        %v560 = vpop.f32.mrb[0].mxu0
        %v561 = vadd.f32 %v446, %v560
        %v562 = vpop.f32.mrb[0].mxu0
        %v563 = vpop.f32.mrb[0].mxu0
        %v564 = vadd.f32 %v446, %v563
        %v565 = vpop.f32.mrb[0].mxu0
        %566 = vmatprep.mubr.bf16.mxu0 0
        %567 = vmatmul.mubr.bf16.gmra.mrb[0].mxu0 %v489
        %v568 = vpop.f32.mrb[0].mxu0
        %v569 = vadd.f32 %v446, %v568
        %v570 = vpop.f32.mrb[0].mxu0
        %v571 = vpop.f32.mrb[0].mxu0
        %v572 = vadd.f32 %v446, %v571
        %v573 = vpop.f32.mrb[0].mxu0
        %574 = vmatprep.mubr.bf16.mxu0 0
        %575 = vmatmul.mubr.bf16.gmra.mrb[0].mxu0 %v492
        %v576 = vpop.f32.mrb[0].mxu0
        %v577 = vadd.f32 %v446, %v576
        %v578 = vpop.f32.mrb[0].mxu0
        %v579 = vpop.f32.mrb[0].mxu0
        %v580 = vpop.f32.mrb[0].mxu0
        %581 = vdwg.mxu0
        %vm582 = vcmask 130048
        %583 = vst.msk [vmem:[%s226] sm:$0xff] %vm582, %v529
        %584 = vst.msk [vmem:[%s226 + $0x8] sm:$0xff] %vm582, %v532
        %585 = vst.msk [vmem:[%s226 + $0x10] sm:$0xff] %vm582, %v537
        %586 = vst.msk [vmem:[%s226 + $0x18] sm:$0xff] %vm582, %v540
        %587 = vst.msk [vmem:[%s226 + $0x20] sm:$0xff] %vm582, %v545
        %588 = vst.msk [vmem:[%s226 + $0x28] sm:$0xff] %vm582, %v548
        %589 = vst.msk [vmem:[%s226 + $0x30] sm:$0xff] %vm582, %v553
        %590 = vst.msk [vmem:[%s226 + $0x38] sm:$0xff] %vm582, %v556
        %591 = vst.msk [vmem:[%s226 + $0x40] sm:$0xff] %vm582, %v561
        %592 = vst.msk [vmem:[%s226 + $0x48] sm:$0xff] %vm582, %v564
        %593 = vst.msk [vmem:[%s226 + $0x50] sm:$0xff] %vm582, %v569
        %594 = vst.msk [vmem:[%s226 + $0x58] sm:$0xff] %vm582, %v572
        %595 = vst.msk [vmem:[%s226 + $0x60] sm:$0xff] %vm582, %v577
        %s596 = sand.u32 %s134, 1
        %s597 = sand.u32 %s134, 1
        %s598 = smul.addr %s597, 104
        %s599 = scalar_lea.vmem [#allocation2], %s598
        // Predicated region
        $region41: #{tpu_custom_call.1} parent=39 // pred_check
          %p600 = pneg %p144
        $region42: #{tpu_custom_call.1} parent=39 // pred_check_branch
          %602 = sbr.rel (%p600) target = $region44
        $region43: #{tpu_custom_call.1} parent=39 // pred_region
          %s603 = smul.u32 13, %s16
          %s604 = ssub.s32 25, %s603
          %p605 = scmp.lt.s32.totalorder %s604, 13
          %s606 = scalar_select %p605, %s604, 13
          %s607 = smul.u32 128, %s606
          %p608 = scmp.ne.s32.totalorder 0, %s607
          %s609 = smul.addr %s603, 8
          %s610 = scalar_lea.vmem %s5, %s609
          // Predicated region
          $region45: #{tpu_custom_call.1} parent=43 // pred_check
            %p611 = pneg %p608
          $region46: #{tpu_custom_call.1} parent=43 // pred_check_branch
            %613 = sbr.rel (%p611) target = $region48
          $region47: #{tpu_custom_call.1} parent=43 // pred_region
            // Predicated region
            $region49: #{tpu_custom_call.1} parent=47 // pred_check
              _
            $region50: #{tpu_custom_call.1} parent=47 // pred_check_branch
              %615 = sbr.rel (0) target = $region52
            $region51: #{tpu_custom_call.1} parent=47 // pred_region
              // Predicated region
              $region71: #{tpu_custom_call.1} parent=51 // pred_check
                _
              $region72: #{tpu_custom_call.1} parent=51 // pred_check_branch
                %689 = sbr.rel (0) target = $region74
              $region73: #{tpu_custom_call.1} parent=51 // pred_region
                %s690 = sdiv.u32.pop %s606, 13
                %s691 = srem.u32.pop %s606, 13
                // While loop
                $region75: #{tpu_custom_call.1} parent=73 // loop_pre_header
                  _
                $region76: #{tpu_custom_call.1} parent=73 // loop_header
                  %s693 = sphi 0, %s695
                  %p694 = scmp.ge.s32.totalorder %s693, %s690
                  %s698 = sphi 0, %s729
                  %s699 = sphi %s599, %s732
                  %s700 = sphi %s610, %s733
                $region77: #{tpu_custom_call.1} parent=73 // loop_header_branch
                  %697 = sbr.rel (%p694) target = $region81
                $region78: #{tpu_custom_call.1} parent=73 // loop_body
                  %v701 = vld [vmem:[%s699] sm:$0xff]
                  %702 = vst [vmem:[%s700] sm:$0xff] %v701
                  %v703 = vld [vmem:[%s699 + $0x8] sm:$0xff]
                  %704 = vst [vmem:[%s700 + $0x8] sm:$0xff] %v703
                  %v705 = vld [vmem:[%s699 + $0x10] sm:$0xff]
                  %706 = vst [vmem:[%s700 + $0x10] sm:$0xff] %v705
                  %v707 = vld [vmem:[%s699 + $0x18] sm:$0xff]
                  %708 = vst [vmem:[%s700 + $0x18] sm:$0xff] %v707
                  %v709 = vld [vmem:[%s699 + $0x20] sm:$0xff]
                  %710 = vst [vmem:[%s700 + $0x20] sm:$0xff] %v709
                  %v711 = vld [vmem:[%s699 + $0x28] sm:$0xff]
                  %712 = vst [vmem:[%s700 + $0x28] sm:$0xff] %v711
                  %v713 = vld [vmem:[%s699 + $0x30] sm:$0xff]
                  %714 = vst [vmem:[%s700 + $0x30] sm:$0xff] %v713
                  %v715 = vld [vmem:[%s699 + $0x38] sm:$0xff]
                  %716 = vst [vmem:[%s700 + $0x38] sm:$0xff] %v715
                  %v717 = vld [vmem:[%s699 + $0x40] sm:$0xff]
                  %718 = vst [vmem:[%s700 + $0x40] sm:$0xff] %v717
                  %v719 = vld [vmem:[%s699 + $0x48] sm:$0xff]
                  %720 = vst [vmem:[%s700 + $0x48] sm:$0xff] %v719
                  %v721 = vld [vmem:[%s699 + $0x50] sm:$0xff]
                  %722 = vst [vmem:[%s700 + $0x50] sm:$0xff] %v721
                  %v723 = vld [vmem:[%s699 + $0x58] sm:$0xff]
                  %724 = vst [vmem:[%s700 + $0x58] sm:$0xff] %v723
                  %v725 = vld [vmem:[%s699 + $0x60] sm:$0xff]
                  %726 = vst [vmem:[%s700 + $0x60] sm:$0xff] %v725
                  %s727 = sadd.s32 1, %s698
                  %p728 = scmp.ge.s32.totalorder %s727, %s690
                  %s729 = scalar_select %p728, 0, %s727
                  %s730 = smul.u32 %s729, 104
                  %s731 = smul.u32 %s729, 104
                  %s732 = scalar_lea.vmem %s599, %s730 [#allocation2]
                  %s733 = scalar_lea.vmem %s610, %s731
                $region79: #{tpu_custom_call.1} parent=73 // loop_footer
                  %s695 = sadd.s32 %s693, 1
                $region80: #{tpu_custom_call.1} parent=73 // loop_footer_branch
                  %692 = sbr.rel target = $region76
                $region81: #{tpu_custom_call.1} parent=73 // loop_exit
                  _
                %s734 = sdiv.u32.pop %s606, 13
                %s735 = srem.u32.pop %s606, 13
                %s736 = smul.u32 %s734, 13
                %s737 = smul.u32 8, %s736
                %s738 = scalar_lea.vmem %s599, %s737 [#allocation2]
                %s739 = smul.u32 8, %s736
                %s740 = scalar_lea.vmem %s610, %s739
                // While loop
                $region82: #{tpu_custom_call.1} parent=73 // loop_pre_header
                  _
                $region83: #{tpu_custom_call.1} parent=73 // loop_header
                  %s742 = sphi 0, %s744
                  %p743 = scmp.ge.s32.totalorder %s742, %s735
                  %s747 = sphi 0, %s754
                  %s748 = sphi %s738, %s757
                  %s749 = sphi %s740, %s758
                $region84: #{tpu_custom_call.1} parent=73 // loop_header_branch
                  %746 = sbr.rel (%p743) target = $region88
                $region85: #{tpu_custom_call.1} parent=73 // loop_body
                  %v750 = vld [vmem:[%s748] sm:$0xff]
                  %751 = vst [vmem:[%s749] sm:$0xff] %v750
                  %s752 = sadd.s32 1, %s747
                  %p753 = scmp.ge.s32.totalorder %s752, %s735
                  %s754 = scalar_select %p753, 0, %s752
                  %s755 = smul.u32 %s754, 8
                  %s756 = smul.u32 %s754, 8
                  %s757 = scalar_lea.vmem %s738, %s755 [#allocation2]
                  %s758 = scalar_lea.vmem %s740, %s756
                $region86: #{tpu_custom_call.1} parent=73 // loop_footer
                  %s744 = sadd.s32 %s742, 1
                $region87: #{tpu_custom_call.1} parent=73 // loop_footer_branch
                  %741 = sbr.rel target = $region83
                $region88: #{tpu_custom_call.1} parent=73 // loop_exit
                  _
              $region74: #{tpu_custom_call.1} parent=51 // pred_fallthru
                _
              // Predicated region
              $region89: #{tpu_custom_call.1} parent=51 // pred_check
                _
              $region90: #{tpu_custom_call.1} parent=51 // pred_check_branch
                %760 = sbr.rel target = $region92
              $region91: #{tpu_custom_call.1} parent=51 // pred_region
                _
              $region92: #{tpu_custom_call.1} parent=51 // pred_fallthru
                _
            $region52: #{tpu_custom_call.1} parent=47 // pred_fallthru
              _
            // Predicated region
            $region53: #{tpu_custom_call.1} parent=47 // pred_check
              _
            $region54: #{tpu_custom_call.1} parent=47 // pred_check_branch
              %617 = sbr.rel target = $region56
            $region55: #{tpu_custom_call.1} parent=47 // pred_region
              %s619 = sdiv.u32.pop %s606, 13
              %s620 = srem.u32.pop %s606, 13
              // While loop
              $region57: #{tpu_custom_call.1} parent=55 // loop_pre_header
                _
              $region58: #{tpu_custom_call.1} parent=55 // loop_header
                %s622 = sphi 0, %s624
                %p623 = scmp.ge.s32.totalorder %s622, %s619
                %s627 = sphi 0, %s658
                %s628 = sphi %s599, %s661
                %s629 = sphi %s610, %s662
              $region59: #{tpu_custom_call.1} parent=55 // loop_header_branch
                %626 = sbr.rel (%p623) target = $region63
              $region60: #{tpu_custom_call.1} parent=55 // loop_body
                %v630 = vld [vmem:[%s628] sm:$0xff]
                %631 = vst [vmem:[%s629] sm:$0xff] %v630
                %v632 = vld [vmem:[%s628 + $0x8] sm:$0xff]
                %633 = vst [vmem:[%s629 + $0x8] sm:$0xff] %v632
                %v634 = vld [vmem:[%s628 + $0x10] sm:$0xff]
                %635 = vst [vmem:[%s629 + $0x10] sm:$0xff] %v634
                %v636 = vld [vmem:[%s628 + $0x18] sm:$0xff]
                %637 = vst [vmem:[%s629 + $0x18] sm:$0xff] %v636
                %v638 = vld [vmem:[%s628 + $0x20] sm:$0xff]
                %639 = vst [vmem:[%s629 + $0x20] sm:$0xff] %v638
                %v640 = vld [vmem:[%s628 + $0x28] sm:$0xff]
                %641 = vst [vmem:[%s629 + $0x28] sm:$0xff] %v640
                %v642 = vld [vmem:[%s628 + $0x30] sm:$0xff]
                %643 = vst [vmem:[%s629 + $0x30] sm:$0xff] %v642
                %v644 = vld [vmem:[%s628 + $0x38] sm:$0xff]
                %645 = vst [vmem:[%s629 + $0x38] sm:$0xff] %v644
                %v646 = vld [vmem:[%s628 + $0x40] sm:$0xff]
                %647 = vst [vmem:[%s629 + $0x40] sm:$0xff] %v646
                %v648 = vld [vmem:[%s628 + $0x48] sm:$0xff]
                %649 = vst [vmem:[%s629 + $0x48] sm:$0xff] %v648
                %v650 = vld [vmem:[%s628 + $0x50] sm:$0xff]
                %651 = vst [vmem:[%s629 + $0x50] sm:$0xff] %v650
                %v652 = vld [vmem:[%s628 + $0x58] sm:$0xff]
                %653 = vst [vmem:[%s629 + $0x58] sm:$0xff] %v652
                %v654 = vld [vmem:[%s628 + $0x60] sm:$0xff]
                %655 = vst [vmem:[%s629 + $0x60] sm:$0xff] %v654
                %s656 = sadd.s32 1, %s627
                %p657 = scmp.ge.s32.totalorder %s656, %s619
                %s658 = scalar_select %p657, 0, %s656
                %s659 = smul.u32 %s658, 104
                %s660 = smul.u32 %s658, 104
                %s661 = scalar_lea.vmem %s599, %s659 [#allocation2]
                %s662 = scalar_lea.vmem %s610, %s660
              $region61: #{tpu_custom_call.1} parent=55 // loop_footer
                %s624 = sadd.s32 %s622, 1
              $region62: #{tpu_custom_call.1} parent=55 // loop_footer_branch
                %621 = sbr.rel target = $region58
              $region63: #{tpu_custom_call.1} parent=55 // loop_exit
                _
              %s663 = sdiv.u32.pop %s606, 13
              %s664 = srem.u32.pop %s606, 13
              %s665 = smul.u32 %s663, 13
              %s666 = smul.u32 8, %s665
              %s667 = scalar_lea.vmem %s599, %s666 [#allocation2]
              %s668 = smul.u32 8, %s665
              %s669 = scalar_lea.vmem %s610, %s668
              // While loop
              $region64: #{tpu_custom_call.1} parent=55 // loop_pre_header
                _
              $region65: #{tpu_custom_call.1} parent=55 // loop_header
                %s671 = sphi 0, %s673
                %p672 = scmp.ge.s32.totalorder %s671, %s664
                %s676 = sphi 0, %s683
                %s677 = sphi %s667, %s686
                %s678 = sphi %s669, %s687
              $region66: #{tpu_custom_call.1} parent=55 // loop_header_branch
                %675 = sbr.rel (%p672) target = $region70
              $region67: #{tpu_custom_call.1} parent=55 // loop_body
                %v679 = vld [vmem:[%s677] sm:$0xff]
                %680 = vst [vmem:[%s678] sm:$0xff] %v679
                %s681 = sadd.s32 1, %s676
                %p682 = scmp.ge.s32.totalorder %s681, %s664
                %s683 = scalar_select %p682, 0, %s681
                %s684 = smul.u32 %s683, 8
                %s685 = smul.u32 %s683, 8
                %s686 = scalar_lea.vmem %s667, %s684 [#allocation2]
                %s687 = scalar_lea.vmem %s669, %s685
              $region68: #{tpu_custom_call.1} parent=55 // loop_footer
                %s673 = sadd.s32 %s671, 1
              $region69: #{tpu_custom_call.1} parent=55 // loop_footer_branch
                %670 = sbr.rel target = $region65
              $region70: #{tpu_custom_call.1} parent=55 // loop_exit
                _
            $region56: #{tpu_custom_call.1} parent=47 // pred_fallthru
              _
          $region48: #{tpu_custom_call.1} parent=43 // pred_fallthru
            _
          %761 = vnop
        $region44: #{tpu_custom_call.1} parent=39 // pred_fallthru
          _
      $region40: #{tpu_custom_call.1} parent=5 // pred_fallthru
        _
      %p762 = scmp.le.s32.totalorder 2, %s11
      // Predicated region
      $region93: #{tpu_custom_call.1} parent=5 // pred_check
        %p763 = pneg %p762
      $region94: #{tpu_custom_call.1} parent=5 // pred_check_branch
        %765 = sbr.rel (%p763) target = $region96
      $region95: #{tpu_custom_call.1} parent=5 // pred_region
        %s766 = ssub.s32 %s11, 2
        // Predicated region
        $region97: #{tpu_custom_call.1} parent=95 // pred_check
          %p767 = pneg %p150
        $region98: #{tpu_custom_call.1} parent=95 // pred_check_branch
          %769 = sbr.rel (%p767) target = $region100
        $region99: #{tpu_custom_call.1} parent=95 // pred_region
          %s770 = sand.u32 %s135, 1
          %s771 = sand.u32 %s135, 1
          %s772 = smul.addr %s771, 104
          %s773 = scalar_lea.vmem [#allocation2], %s772
        $region100: #{tpu_custom_call.1} parent=95 // pred_fallthru
          _
      $region96: #{tpu_custom_call.1} parent=5 // pred_fallthru
        _
    $region6: #{tpu_custom_call.1} parent=1 // loop_footer
      %s15 = sadd.s32 1, %s11
    $region7: #{tpu_custom_call.1} parent=1 // loop_footer_branch
      %10 = sbr.rel target = $region3
    $region8: #{tpu_custom_call.1} parent=1 // loop_exit
      _

// kernel: tpu_custom_call.1
$region0: #{tpu_custom_call.1}
  #allocation0 [shape = 'u32[]', space=smem, size = 0x4, offset = 0x4, fixed_abs, tag = 'smem constant byte address 0x4 - core index']
  #allocation1 [shape = 'u32[144,128]{1,0:T(1,128)}', space=vmem, size = 0x12000, scoped, tag = 'internal scratch']
  %s0 = inlined_call_operand.vmem [shape: bf16[200,32], index: 0, kind: input, shape index: {}]
  %s1 = inlined_call_operand.vmem [shape: bf16[32,64], index: 1, kind: input, shape index: {}]
  %s2 = inlined_call_operand.vmem [shape: f32[1,64], index: 2, kind: input, shape index: {}]
  %s3 = inlined_call_operand.vmem [shape: bf16[64,16], index: 3, kind: input, shape index: {}]
  %s4 = inlined_call_operand.vmem [shape: f32[1,16], index: 4, kind: input, shape index: {}]
  %s5 = inlined_call_operand.vmem [shape: f32[200,16], index: 5, kind: output, shape index: {}]
  %s6 = sld [smem:[#allocation0]]
  $region101: #{tpu_custom_call.1} parent=0
    _
  %s8 = ssub.s32 1, %s6
  %s9 = scalar_select 0, %s8, %s6
  $region1: #{tpu_custom_call.1} parent=0
    #allocation2 [shape = 'u8[106496]{0}', space=vmem, size = 0x1a000, scoped, tag = 'output window, operand 0']
    loop: start=0, step=1, limit=4
    $region2: #{tpu_custom_call.1} parent=1 // loop_pre_header
      _
    $region3: #{tpu_custom_call.1} parent=1 // loop_header
      %s11 = sphi 0, %s15
      %p12 = scmp.ge.s32.totalorder %s11, 4
      %s21 = sphi 0, %s23
      %s24 = sphi 0, %s21
      %s25 = sphi 0, %s24
      %s41 = sphi 0, %s25
      %s45 = sphi 0, %s45
      %s47 = sphi 0, %s45
      %s48 = sphi 0, %s47
      %s62 = sphi 0, %s48
      %s66 = sphi 0, %s66
      %s68 = sphi 0, %s66
      %s69 = sphi 0, %s68
      %s83 = sphi 0, %s69
      %s87 = sphi 0, %s87
      %s89 = sphi 0, %s87
      %s90 = sphi 0, %s89
      %s104 = sphi 0, %s90
      %s108 = sphi 0, %s108
      %s110 = sphi 0, %s108
      %s111 = sphi 0, %s110
      %s125 = sphi 0, %s111
      %s131 = sphi 0, %s133
      %s134 = sphi 0, %s131
      %s135 = sphi 0, %s134
      %s151 = sphi 0, %s135
    $region4: #{tpu_custom_call.1} parent=1 // loop_header_branch
      %14 = sbr.rel (%p12) target = $region8
    $region5: #{tpu_custom_call.1} parent=1 // loop_body
      %s16 = ssub.s32 %s11, 1
      %s17 = ssub.s32 %s11, 2
      %s18 = sadd.s32 %s11, 1
      %s19 = ssub.s32 %s11, %s18
      %p20 = scmp.eq.s32.totalorder %s19, 0
      %s22 = sadd.s32 %s21, 1
      %s23 = scalar_select %p20, %s21, %s22
      %p26 = pneg %p20
      %p27 = scmp.eq.s32.totalorder %s11, 1
      %p28 = por %p26, %p27
      %p29 = scmp.ne.s32.totalorder %s21, %s24
      %p30 = scmp.eq.s32.totalorder %s11, 0
      %p31 = por %p29, %p30
      %p32 = scmp.ne.s32.totalorder %s21, %s24
      %p33 = scmp.eq.s32.totalorder %s16, 1
      %p34 = por %p32, %p33
      %p35 = scmp.ne.s32.totalorder %s24, %s25
      %p36 = scmp.eq.s32.totalorder %s16, 0
      %p37 = por %p35, %p36
      %p38 = scmp.ne.s32.totalorder %s24, %s25
      %p39 = scmp.eq.s32.totalorder %s17, 1
      %p40 = por %p38, %p39
      %p42 = scmp.ne.s32.totalorder %s25, %s41
      %p43 = scmp.eq.s32.totalorder %s17, 0
      %p44 = por %p42, %p43
      %s46 = sadd.s32 %s45, 1
      %p49 = scmp.eq.s32.totalorder %s11, 1
      %p50 = scmp.ne.s32.totalorder %s45, %s47
      %p51 = scmp.eq.s32.totalorder %s11, 0
      %p52 = por %p50, %p51
      %p53 = scmp.ne.s32.totalorder %s45, %s47
      %p54 = scmp.eq.s32.totalorder %s16, 1
      %p55 = por %p53, %p54
      %p56 = scmp.ne.s32.totalorder %s47, %s48
      %p57 = scmp.eq.s32.totalorder %s16, 0
      %p58 = por %p56, %p57
      %p59 = scmp.ne.s32.totalorder %s47, %s48
      %p60 = scmp.eq.s32.totalorder %s17, 1
      %p61 = por %p59, %p60
      %p63 = scmp.ne.s32.totalorder %s48, %s62
      %p64 = scmp.eq.s32.totalorder %s17, 0
      %p65 = por %p63, %p64
      %s67 = sadd.s32 %s66, 1
      %p70 = scmp.eq.s32.totalorder %s11, 1
      %p71 = scmp.ne.s32.totalorder %s66, %s68
      %p72 = scmp.eq.s32.totalorder %s11, 0
      %p73 = por %p71, %p72
      %p74 = scmp.ne.s32.totalorder %s66, %s68
      %p75 = scmp.eq.s32.totalorder %s16, 1
      %p76 = por %p74, %p75
      %p77 = scmp.ne.s32.totalorder %s68, %s69
      %p78 = scmp.eq.s32.totalorder %s16, 0
      %p79 = por %p77, %p78
      %p80 = scmp.ne.s32.totalorder %s68, %s69
      %p81 = scmp.eq.s32.totalorder %s17, 1
      %p82 = por %p80, %p81
      %p84 = scmp.ne.s32.totalorder %s69, %s83
      %p85 = scmp.eq.s32.totalorder %s17, 0
      %p86 = por %p84, %p85
      %s88 = sadd.s32 %s87, 1
      %p91 = scmp.eq.s32.totalorder %s11, 1
      %p92 = scmp.ne.s32.totalorder %s87, %s89
      %p93 = scmp.eq.s32.totalorder %s11, 0
      %p94 = por %p92, %p93
      %p95 = scmp.ne.s32.totalorder %s87, %s89
      %p96 = scmp.eq.s32.totalorder %s16, 1
      %p97 = por %p95, %p96
      %p98 = scmp.ne.s32.totalorder %s89, %s90
      %p99 = scmp.eq.s32.totalorder %s16, 0
      %p100 = por %p98, %p99
      %p101 = scmp.ne.s32.totalorder %s89, %s90
      %p102 = scmp.eq.s32.totalorder %s17, 1
      %p103 = por %p101, %p102
      %p105 = scmp.ne.s32.totalorder %s90, %s104
      %p106 = scmp.eq.s32.totalorder %s17, 0
      %p107 = por %p105, %p106
      %s109 = sadd.s32 %s108, 1
      %p112 = scmp.eq.s32.totalorder %s11, 1
      %p113 = scmp.ne.s32.totalorder %s108, %s110
      %p114 = scmp.eq.s32.totalorder %s11, 0
      %p115 = por %p113, %p114
      %p116 = scmp.ne.s32.totalorder %s108, %s110
      %p117 = scmp.eq.s32.totalorder %s16, 1
      %p118 = por %p116, %p117
      %p119 = scmp.ne.s32.totalorder %s110, %s111
      %p120 = scmp.eq.s32.totalorder %s16, 0
      %p121 = por %p119, %p120
      %p122 = scmp.ne.s32.totalorder %s110, %s111
      %p123 = scmp.eq.s32.totalorder %s17, 1
      %p124 = por %p122, %p123
      %p126 = scmp.ne.s32.totalorder %s111, %s125
      %p127 = scmp.eq.s32.totalorder %s17, 0
      %p128 = por %p126, %p127
      %s129 = ssub.s32 %s11, %s18
      %p130 = scmp.eq.s32.totalorder %s129, 0
      %s132 = sadd.s32 %s131, 1
      %s133 = scalar_select %p130, %s131, %s132
      %p136 = pneg %p130
      %p137 = scmp.eq.s32.totalorder %s11, 1
      %p138 = por %p136, %p137
      %p139 = scmp.ne.s32.totalorder %s131, %s134
      %p140 = scmp.eq.s32.totalorder %s11, 0
      %p141 = por %p139, %p140
      %p142 = scmp.ne.s32.totalorder %s131, %s134
      %p143 = scmp.eq.s32.totalorder %s16, 1
      %p144 = por %p142, %p143
      %p145 = scmp.ne.s32.totalorder %s134, %s135
      %p146 = scmp.eq.s32.totalorder %s16, 0
      %p147 = por %p145, %p146
      %p148 = scmp.ne.s32.totalorder %s134, %s135
      %p149 = scmp.eq.s32.totalorder %s17, 1
      %p150 = por %p148, %p149
      %p152 = scmp.ne.s32.totalorder %s135, %s151
      %p153 = scmp.eq.s32.totalorder %s17, 0
      %p154 = por %p152, %p153
      %p155 = scmp.le.s32.totalorder 1, %s11
      %p156 = scmp.lt.s32.totalorder %s11, 3
      %p157 = pnand %p155, %p156
      %p158 = pneg %p157
      // Predicated region
      $region9: #{tpu_custom_call.1} parent=5 // pred_check
        _
      $region10: #{tpu_custom_call.1} parent=5 // pred_check_branch
        %160 = sbr.rel (%p157) target = $region12
      $region11: #{tpu_custom_call.1} parent=5 // pred_region
        %s161 = ssub.s32 %s11, 1
        // Predicated region
        $region13: #{tpu_custom_call.1} parent=11 // pred_check
          %p162 = pneg %p58
        $region14: #{tpu_custom_call.1} parent=11 // pred_check_branch
          %164 = sbr.rel (%p162) target = $region16
        $region15: #{tpu_custom_call.1} parent=11 // pred_region
          _
        $region16: #{tpu_custom_call.1} parent=11 // pred_fallthru
          _
        // Predicated region
        $region17: #{tpu_custom_call.1} parent=11 // pred_check
          %p165 = pneg %p79
        $region18: #{tpu_custom_call.1} parent=11 // pred_check_branch
          %167 = sbr.rel (%p165) target = $region20
        $region19: #{tpu_custom_call.1} parent=11 // pred_region
          _
        $region20: #{tpu_custom_call.1} parent=11 // pred_fallthru
          _
        // Predicated region
        $region21: #{tpu_custom_call.1} parent=11 // pred_check
          %p168 = pneg %p100
        $region22: #{tpu_custom_call.1} parent=11 // pred_check_branch
          %170 = sbr.rel (%p168) target = $region24
        $region23: #{tpu_custom_call.1} parent=11 // pred_region
          _
        $region24: #{tpu_custom_call.1} parent=11 // pred_fallthru
          _
        // Predicated region
        $region25: #{tpu_custom_call.1} parent=11 // pred_check
          %p171 = pneg %p121
        $region26: #{tpu_custom_call.1} parent=11 // pred_check_branch
          %173 = sbr.rel (%p171) target = $region28
        $region27: #{tpu_custom_call.1} parent=11 // pred_region
          _
        $region28: #{tpu_custom_call.1} parent=11 // pred_fallthru
          _
      $region12: #{tpu_custom_call.1} parent=5 // pred_fallthru
        _
      %p174 = scmp.lt.s32.totalorder %s11, 2
      // Predicated region
      $region29: #{tpu_custom_call.1} parent=5 // pred_check
        %p175 = pneg %p174
      $region30: #{tpu_custom_call.1} parent=5 // pred_check_branch
        %177 = sbr.rel (%p175) target = $region32
      $region31: #{tpu_custom_call.1} parent=5 // pred_region
        // Predicated region
        $region33: #{tpu_custom_call.1} parent=31 // pred_check
          %p178 = pneg %p31
        $region34: #{tpu_custom_call.1} parent=31 // pred_check_branch
          %180 = sbr.rel (%p178) target = $region36
        $region35: #{tpu_custom_call.1} parent=31 // pred_region
          %s181 = smul.u32 13, %s11
          %s182 = ssub.s32 25, %s181
          %p183 = scmp.lt.s32.totalorder %s182, 13
          %s184 = scalar_select %p183, %s182, 13
          %s185 = smul.u32 64, %s184
          %p186 = scmp.lt.s32.totalorder %s181, 24
          %s187 = scalar_select %p186, %s181, 24
          %s188 = smul.addr %s187, 4
          %s189 = scalar_lea.vmem %s0, %s188
          %s190 = smul.u32 13, %s11
          %s191 = ssub.s32 25, %s190
          %p192 = scmp.lt.s32.totalorder %s191, 13
          %s193 = scalar_select %p192, %s191, 13
          %s194 = smul.u32 64, %s193
        $region36: #{tpu_custom_call.1} parent=31 // pred_fallthru
          _
      $region32: #{tpu_custom_call.1} parent=5 // pred_fallthru
        _
      %p195 = scmp.le.s32.totalorder 1, %s11
      %p196 = scmp.lt.s32.totalorder %s11, 3
      %p197 = pnand %p195, %p196
      %p198 = pneg %p197
      // Predicated region
      $region37: #{tpu_custom_call.1} parent=5 // pred_check
        _
      $region38: #{tpu_custom_call.1} parent=5 // pred_check_branch
        %200 = sbr.rel (%p197) target = $region40
      $region39: #{tpu_custom_call.1} parent=5 // pred_region
        %s201 = ssub.s32 %s11, 1
        %s202 = smul.u32 13, %s16
        %s203 = ssub.s32 25, %s202
        %p204 = scmp.lt.s32.totalorder %s203, 13
        %s205 = scalar_select %p204, %s203, 13
        %s206 = smul.u32 64, %s205
        %p207 = scmp.lt.s32.totalorder %s202, 24
        %s208 = scalar_select %p207, %s202, 24
        %s209 = smul.addr %s208, 4
        %s210 = scalar_lea.vmem %s0, %s209
        %p211 = pneg %p37
        %p212 = pneg %p34
        %p213 = pneg %p58
        %p214 = pneg %p55
        %p215 = pneg %p79
        %p216 = pneg %p76
        %p217 = pneg %p100
        %p218 = pneg %p97
        %p219 = pneg %p121
        %p220 = pneg %p118
        %p221 = pneg %p147
        %p222 = pneg %p144
        %s223 = sand.u32 %s134, 1
        %s224 = sand.u32 %s134, 1
        %s225 = smul.addr %s224, 104
        %s226 = scalar_lea.vmem [#allocation2], %s225
        %s227 = smul.u32 13, %s16
        %s228 = ssub.s32 25, %s227
        %p229 = scmp.lt.s32.totalorder %s228, 13
        %s230 = scalar_select %p229, %s228, 13
        %s231 = smul.u32 64, %s230
        %p232 = scmp.lt.s32.totalorder %s227, 24
        %s233 = scalar_select %p232, %s227, 24
        %s234 = smul.addr %s233, 4
        %s235 = scalar_lea.vmem %s0, %s234
        %s236 = smul.u32 13, %s16
        %s237 = ssub.s32 25, %s236
        %p238 = scmp.lt.s32.totalorder %s237, 13
        %s239 = scalar_select %p238, %s237, 13
        %s240 = smul.u32 64, %s239
        %s241 = smul.u32 13, %s16
        %s242 = ssub.s32 25, %s241
        %p243 = scmp.lt.s32.totalorder %s242, 13
        %s244 = scalar_select %p243, %s242, 13
        %s245 = smul.u32 128, %s244
        %v247 = vld [vmem:[%s235] sm:$0xf]
        %v248 = vld [vmem:[%s235 + $0x4] sm:$0xf]
        %v249 = vld [vmem:[%s235 + $0x8] sm:$0xf]
        %v250 = vld [vmem:[%s235 + $0xc] sm:$0xf]
        %v251 = vld [vmem:[%s235 + $0x10] sm:$0xf]
        %v252 = vld [vmem:[%s235 + $0x14] sm:$0xf]
        %v253 = vld [vmem:[%s235 + $0x18] sm:$0xf]
        %v254 = vld [vmem:[%s235 + $0x1c] sm:$0xf]
        %v255 = vld [vmem:[%s235 + $0x20] sm:$0xf]
        %v256 = vld [vmem:[%s235 + $0x24] sm:$0xf]
        %v257 = vld [vmem:[%s235 + $0x28] sm:$0xf]
        %v258 = vld [vmem:[%s235 + $0x2c] sm:$0xf]
        %v259 = vld [vmem:[%s235 + $0x30] sm:$0xf]
        %v260 = vld [vmem:[%s1] sm:$0xf]
        %v261 = vld [vmem:[%s1 + $0x4] sm:$0xf]
        %v262 = vld [vmem:[%s1 + $0x8] sm:$0xf]
        %v263 = vld [vmem:[%s1 + $0xc] sm:$0xf]
        %v264 = vld [vmem:[%s2] sm:$0x1]
        %v266 = vlaneseq
        %v267 = vshrl.u32 %v266, 7
        %v268 = vsub.s32 0, %v267
        %v269 = vrot.slane %v264, %v268
        %v284 = vunpack.c.l.b16 %v247
        %v285 = vunpack.c.l.b16 %v248
        %v286 = vunpack.c.l.b16 %v249
        %v287 = vunpack.c.l.b16 %v250
        %v288 = vunpack.c.l.b16 %v251
        %v289 = vunpack.c.l.b16 %v252
        %v290 = vunpack.c.l.b16 %v253
        %v291 = vunpack.c.l.b16 %v254
        %v292 = vunpack.c.l.b16 %v255
        %v293 = vunpack.c.l.b16 %v256
        %v294 = vunpack.c.l.b16 %v257
        %v295 = vunpack.c.l.b16 %v258
        %v296 = vunpack.c.l.b16 %v259
        %v297 = vpack.c.b16 %v285, %v284
        %v298 = vpack.c.b16 %v287, %v286
        %v299 = vpack.c.b16 %v289, %v288
        %v300 = vpack.c.b16 %v291, %v290
        %v301 = vpack.c.b16 %v293, %v292
        %v302 = vpack.c.b16 %v295, %v294
        %v303 = vpack.c.b16 %v296, %v296
        %v308 = vunpack.c.l.b16 %v260
        %v309 = vunpack.c.l.b16 %v261
        %v310 = vunpack.c.l.b16 %v262
        %v311 = vunpack.c.l.b16 %v263
        %v312 = vpack.c.b16 %v309, %v308
        %v313 = vpack.c.b16 %v311, %v310
        %vm316 = vcmask 261120
        %v318 = vsel %vm316, %v297, 0
        %v321 = vsel %vm316, %v298, 0
        %v324 = vsel %vm316, %v299, 0
        %v327 = vsel %vm316, %v300, 0
        %v330 = vsel %vm316, %v301, 0
        %v333 = vsel %vm316, %v302, 0
        %v336 = vsel %vm316, %v303, 0
        %338 = vmatprep.subr.bf16.mxu0 0
        %339 = vmatpush1.bf16.msra.mxu0 %v312
        %340 = vmatprep.subr.bf16.mxu0 0
        %341 = vmatpush1.bf16.msra.mxu0 %v313
        %342 = vmatprep.subr.bf16.mxu0 0
        %343 = vmatpush1.bf16.msra.mxu0 0
        %344 = vmatprep.subr.bf16.mxu0 0
        %345 = vmatpush1.bf16.msra.mxu0 0
        %346 = vmatprep.subr.bf16.mxu0 0
        %347 = vmatpush1.bf16.msra.mxu0 0
        %348 = vmatprep.subr.bf16.mxu0 0
        %349 = vmatpush1.bf16.msra.mxu0 0
        %350 = vmatprep.subr.bf16.mxu0 0
        %351 = vmatpush1.bf16.msra.mxu0 0
        %352 = vmatprep.subr.bf16.mxu0 0
        %353 = vmatpush1.bf16.msra.mxu0 0
        %354 = vmatprep.subr.bf16.mxu0 0
        %355 = vmatpush1.bf16.msra.mxu0 0
        %356 = vmatprep.subr.bf16.mxu0 0
        %357 = vmatpush1.bf16.msra.mxu0 0
        %358 = vmatprep.subr.bf16.mxu0 0
        %359 = vmatpush1.bf16.msra.mxu0 0
        %360 = vmatprep.subr.bf16.mxu0 0
        %361 = vmatpush1.bf16.msra.mxu0 0
        %362 = vmatprep.subr.bf16.mxu0 0
        %363 = vmatpush1.bf16.msra.mxu0 0
        %364 = vmatprep.subr.bf16.mxu0 0
        %365 = vmatpush1.bf16.msra.mxu0 0
        %366 = vmatprep.subr.bf16.mxu0 0
        %367 = vmatpush1.bf16.msra.mxu0 0
        %368 = vmatprep.subr.bf16.mxu0 0
        %369 = vmatpush1.bf16.msra.mxu0 0
        %370 = vmatprep.mubr.bf16.mxu0 0
        %371 = vmatmul.mubr.bf16.gmra.mrb[0].mxu0 %v318
        %v372 = vpop.f32.mrb[0].mxu0
        %v373 = vadd.f32 %v269, %v372
        %v374 = vpop.f32.mrb[0].mxu0
        %v375 = vpop.f32.mrb[0].mxu0
        %v376 = vadd.f32 %v269, %v375
        %v377 = vpop.f32.mrb[0].mxu0
        %378 = vmatprep.mubr.bf16.mxu0 0
        %379 = vmatmul.mubr.bf16.gmra.mrb[0].mxu0 %v321
        %v380 = vpop.f32.mrb[0].mxu0
        %v381 = vadd.f32 %v269, %v380
        %v382 = vpop.f32.mrb[0].mxu0
        %v383 = vpop.f32.mrb[0].mxu0
        %v384 = vadd.f32 %v269, %v383
        %v385 = vpop.f32.mrb[0].mxu0
        %386 = vmatprep.mubr.bf16.mxu0 0
        %387 = vmatmul.mubr.bf16.gmra.mrb[0].mxu0 %v324
        %v388 = vpop.f32.mrb[0].mxu0
        %v389 = vadd.f32 %v269, %v388
        %v390 = vpop.f32.mrb[0].mxu0
        %v391 = vpop.f32.mrb[0].mxu0
        %v392 = vadd.f32 %v269, %v391
        %v393 = vpop.f32.mrb[0].mxu0
        %394 = vmatprep.mubr.bf16.mxu0 0
        %395 = vmatmul.mubr.bf16.gmra.mrb[0].mxu0 %v327
        %v396 = vpop.f32.mrb[0].mxu0
        %v397 = vadd.f32 %v269, %v396
        %v398 = vpop.f32.mrb[0].mxu0
        %v399 = vpop.f32.mrb[0].mxu0
        %v400 = vadd.f32 %v269, %v399
        %v401 = vpop.f32.mrb[0].mxu0
        %402 = vmatprep.mubr.bf16.mxu0 0
        %403 = vmatmul.mubr.bf16.gmra.mrb[0].mxu0 %v330
        %v404 = vpop.f32.mrb[0].mxu0
        %v405 = vadd.f32 %v269, %v404
        %v406 = vpop.f32.mrb[0].mxu0
        %v407 = vpop.f32.mrb[0].mxu0
        %v408 = vadd.f32 %v269, %v407
        %v409 = vpop.f32.mrb[0].mxu0
        %410 = vmatprep.mubr.bf16.mxu0 0
        %411 = vmatmul.mubr.bf16.gmra.mrb[0].mxu0 %v333
        %v412 = vpop.f32.mrb[0].mxu0
        %v413 = vadd.f32 %v269, %v412
        %v414 = vpop.f32.mrb[0].mxu0
        %v415 = vpop.f32.mrb[0].mxu0
        %v416 = vadd.f32 %v269, %v415
        %v417 = vpop.f32.mrb[0].mxu0
        %418 = vmatprep.mubr.bf16.mxu0 0
        %419 = vmatmul.mubr.bf16.gmra.mrb[0].mxu0 %v336
        %v420 = vpop.f32.mrb[0].mxu0
        %v421 = vadd.f32 %v269, %v420
        %v422 = vpop.f32.mrb[0].mxu0
        %v423 = vpop.f32.mrb[0].mxu0
        %v424 = vpop.f32.mrb[0].mxu0
        %425 = vdwg.mxu0
        %v426 = vpack.c.bf16 %v376, %v373
        %v427 = vpack.c.bf16 %v384, %v381
        %v428 = vpack.c.bf16 %v392, %v389
        %v429 = vpack.c.bf16 %v400, %v397
        %v430 = vpack.c.bf16 %v408, %v405
        %v431 = vpack.c.bf16 %v416, %v413
        %v432 = vpack.c.bf16 %v421, %v421
        %v433 = vld [vmem:[%s3] sm:$0xf]
        %v434 = vld [vmem:[%s3 + $0x4] sm:$0xf]
        %v435 = vld [vmem:[%s3 + $0x8] sm:$0xf]
        %v436 = vld [vmem:[%s3 + $0xc] sm:$0xf]
        %v437 = vld [vmem:[%s3 + $0x10] sm:$0xf]
        %v438 = vld [vmem:[%s3 + $0x14] sm:$0xf]
        %v439 = vld [vmem:[%s3 + $0x18] sm:$0xf]
        %v440 = vld [vmem:[%s3 + $0x1c] sm:$0xf]
        %v441 = vld [vmem:[%s4] sm:$0x1]
        %v443 = vlaneseq
        %v444 = vshrl.u32 %v443, 7
        %v445 = vsub.s32 0, %v444
        %v446 = vrot.slane %v441, %v445
        %v456 = vunpack.c.l.b16 %v433
        %v457 = vunpack.c.l.b16 %v434
        %v458 = vunpack.c.l.b16 %v435
        %v459 = vunpack.c.l.b16 %v436
        %v460 = vunpack.c.l.b16 %v437
        %v461 = vunpack.c.l.b16 %v438
        %v462 = vunpack.c.l.b16 %v439
        %v463 = vunpack.c.l.b16 %v440
        %v464 = vpack.c.b16 %v457, %v456
        %v465 = vpack.c.b16 %v459, %v458
        %v466 = vpack.c.b16 %v461, %v460
        %v467 = vpack.c.b16 %v463, %v462
        %vm472 = vcmask 523264
        %v474 = vsel %vm472, %v426, 0
        %v477 = vsel %vm472, %v427, 0
        %v480 = vsel %vm472, %v428, 0
        %v483 = vsel %vm472, %v429, 0
        %v486 = vsel %vm472, %v430, 0
        %v489 = vsel %vm472, %v431, 0
        %v492 = vsel %vm472, %v432, 0
        %494 = vmatprep.subr.bf16.mxu0 0
        %495 = vmatpush1.bf16.msra.mxu0 %v464
        %496 = vmatprep.subr.bf16.mxu0 0
        %497 = vmatpush1.bf16.msra.mxu0 %v465
        %498 = vmatprep.subr.bf16.mxu0 0
        %499 = vmatpush1.bf16.msra.mxu0 %v466
        %500 = vmatprep.subr.bf16.mxu0 0
        %501 = vmatpush1.bf16.msra.mxu0 %v467
        %502 = vmatprep.subr.bf16.mxu0 0
        %503 = vmatpush1.bf16.msra.mxu0 0
        %504 = vmatprep.subr.bf16.mxu0 0
        %505 = vmatpush1.bf16.msra.mxu0 0
        %506 = vmatprep.subr.bf16.mxu0 0
        %507 = vmatpush1.bf16.msra.mxu0 0
        %508 = vmatprep.subr.bf16.mxu0 0
        %509 = vmatpush1.bf16.msra.mxu0 0
        %510 = vmatprep.subr.bf16.mxu0 0
        %511 = vmatpush1.bf16.msra.mxu0 0
        %512 = vmatprep.subr.bf16.mxu0 0
        %513 = vmatpush1.bf16.msra.mxu0 0
        %514 = vmatprep.subr.bf16.mxu0 0
        %515 = vmatpush1.bf16.msra.mxu0 0
        %516 = vmatprep.subr.bf16.mxu0 0
        %517 = vmatpush1.bf16.msra.mxu0 0
        %518 = vmatprep.subr.bf16.mxu0 0
        %519 = vmatpush1.bf16.msra.mxu0 0
        %520 = vmatprep.subr.bf16.mxu0 0
        %521 = vmatpush1.bf16.msra.mxu0 0
        %522 = vmatprep.subr.bf16.mxu0 0
        %523 = vmatpush1.bf16.msra.mxu0 0
        %524 = vmatprep.subr.bf16.mxu0 0
        %525 = vmatpush1.bf16.msra.mxu0 0
        %526 = vmatprep.mubr.bf16.mxu0 0
        %527 = vmatmul.mubr.bf16.gmra.mrb[0].mxu0 %v474
        %v528 = vpop.f32.mrb[0].mxu0
        %v529 = vadd.f32 %v446, %v528
        %v530 = vpop.f32.mrb[0].mxu0
        %v531 = vpop.f32.mrb[0].mxu0
        %v532 = vadd.f32 %v446, %v531
        %v533 = vpop.f32.mrb[0].mxu0
        %534 = vmatprep.mubr.bf16.mxu0 0
        %535 = vmatmul.mubr.bf16.gmra.mrb[0].mxu0 %v477
        %v536 = vpop.f32.mrb[0].mxu0
        %v537 = vadd.f32 %v446, %v536
        %v538 = vpop.f32.mrb[0].mxu0
        %v539 = vpop.f32.mrb[0].mxu0
        %v540 = vadd.f32 %v446, %v539
        %v541 = vpop.f32.mrb[0].mxu0
        %542 = vmatprep.mubr.bf16.mxu0 0
        %543 = vmatmul.mubr.bf16.gmra.mrb[0].mxu0 %v480
        %v544 = vpop.f32.mrb[0].mxu0
        %v545 = vadd.f32 %v446, %v544
        %v546 = vpop.f32.mrb[0].mxu0
        %v547 = vpop.f32.mrb[0].mxu0
        %v548 = vadd.f32 %v446, %v547
        %v549 = vpop.f32.mrb[0].mxu0
        %550 = vmatprep.mubr.bf16.mxu0 0
        %551 = vmatmul.mubr.bf16.gmra.mrb[0].mxu0 %v483
        %v552 = vpop.f32.mrb[0].mxu0
        %v553 = vadd.f32 %v446, %v552
        %v554 = vpop.f32.mrb[0].mxu0
        %v555 = vpop.f32.mrb[0].mxu0
        %v556 = vadd.f32 %v446, %v555
        %v557 = vpop.f32.mrb[0].mxu0
        %558 = vmatprep.mubr.bf16.mxu0 0
        %559 = vmatmul.mubr.bf16.gmra.mrb[0].mxu0 %v486
        %v560 = vpop.f32.mrb[0].mxu0
        %v561 = vadd.f32 %v446, %v560
        %v562 = vpop.f32.mrb[0].mxu0
        %v563 = vpop.f32.mrb[0].mxu0
        %v564 = vadd.f32 %v446, %v563
        %v565 = vpop.f32.mrb[0].mxu0
        %566 = vmatprep.mubr.bf16.mxu0 0
        %567 = vmatmul.mubr.bf16.gmra.mrb[0].mxu0 %v489
        %v568 = vpop.f32.mrb[0].mxu0
        %v569 = vadd.f32 %v446, %v568
        %v570 = vpop.f32.mrb[0].mxu0
        %v571 = vpop.f32.mrb[0].mxu0
        %v572 = vadd.f32 %v446, %v571
        %v573 = vpop.f32.mrb[0].mxu0
        %574 = vmatprep.mubr.bf16.mxu0 0
        %575 = vmatmul.mubr.bf16.gmra.mrb[0].mxu0 %v492
        %v576 = vpop.f32.mrb[0].mxu0
        %v577 = vadd.f32 %v446, %v576
        %v578 = vpop.f32.mrb[0].mxu0
        %v579 = vpop.f32.mrb[0].mxu0
        %v580 = vpop.f32.mrb[0].mxu0
        %581 = vdwg.mxu0
        %vm582 = vcmask 130048
        %583 = vst.msk [vmem:[%s226] sm:$0xff] %vm582, %v529
        %584 = vst.msk [vmem:[%s226 + $0x8] sm:$0xff] %vm582, %v532
        %585 = vst.msk [vmem:[%s226 + $0x10] sm:$0xff] %vm582, %v537
        %586 = vst.msk [vmem:[%s226 + $0x18] sm:$0xff] %vm582, %v540
        %587 = vst.msk [vmem:[%s226 + $0x20] sm:$0xff] %vm582, %v545
        %588 = vst.msk [vmem:[%s226 + $0x28] sm:$0xff] %vm582, %v548
        %589 = vst.msk [vmem:[%s226 + $0x30] sm:$0xff] %vm582, %v553
        %590 = vst.msk [vmem:[%s226 + $0x38] sm:$0xff] %vm582, %v556
        %591 = vst.msk [vmem:[%s226 + $0x40] sm:$0xff] %vm582, %v561
        %592 = vst.msk [vmem:[%s226 + $0x48] sm:$0xff] %vm582, %v564
        %593 = vst.msk [vmem:[%s226 + $0x50] sm:$0xff] %vm582, %v569
        %594 = vst.msk [vmem:[%s226 + $0x58] sm:$0xff] %vm582, %v572
        %595 = vst.msk [vmem:[%s226 + $0x60] sm:$0xff] %vm582, %v577
        %s596 = sand.u32 %s134, 1
        %s597 = sand.u32 %s134, 1
        %s598 = smul.addr %s597, 104
        %s599 = scalar_lea.vmem [#allocation2], %s598
        // Predicated region
        $region41: #{tpu_custom_call.1} parent=39 // pred_check
          %p600 = pneg %p144
        $region42: #{tpu_custom_call.1} parent=39 // pred_check_branch
          %602 = sbr.rel (%p600) target = $region44
        $region43: #{tpu_custom_call.1} parent=39 // pred_region
          %s603 = smul.u32 13, %s16
          %s604 = ssub.s32 25, %s603
          %p605 = scmp.lt.s32.totalorder %s604, 13
          %s606 = scalar_select %p605, %s604, 13
          %s607 = smul.u32 128, %s606
          %p608 = scmp.ne.s32.totalorder 0, %s607
          %s609 = smul.addr %s603, 8
          %s610 = scalar_lea.vmem %s5, %s609
          // Predicated region
          $region45: #{tpu_custom_call.1} parent=43 // pred_check
            %p611 = pneg %p608
          $region46: #{tpu_custom_call.1} parent=43 // pred_check_branch
            %613 = sbr.rel (%p611) target = $region48
          $region47: #{tpu_custom_call.1} parent=43 // pred_region
            // Predicated region
            $region49: #{tpu_custom_call.1} parent=47 // pred_check
              _
            $region50: #{tpu_custom_call.1} parent=47 // pred_check_branch
              %615 = sbr.rel (0) target = $region52
            $region51: #{tpu_custom_call.1} parent=47 // pred_region
              // Predicated region
              $region71: #{tpu_custom_call.1} parent=51 // pred_check
                _
              $region72: #{tpu_custom_call.1} parent=51 // pred_check_branch
                %689 = sbr.rel (0) target = $region74
              $region73: #{tpu_custom_call.1} parent=51 // pred_region
                %s690 = sdiv.u32.pop %s606, 13
                %s691 = srem.u32.pop %s606, 13
                // While loop
                $region75: #{tpu_custom_call.1} parent=73 // loop_pre_header
                  _
                $region76: #{tpu_custom_call.1} parent=73 // loop_header
                  %s693 = sphi 0, %s695
                  %p694 = scmp.ge.s32.totalorder %s693, %s690
                  %s698 = sphi 0, %s729
                  %s699 = sphi %s599, %s732
                  %s700 = sphi %s610, %s733
                $region77: #{tpu_custom_call.1} parent=73 // loop_header_branch
                  %697 = sbr.rel (%p694) target = $region81
                $region78: #{tpu_custom_call.1} parent=73 // loop_body
                  %v701 = vld [vmem:[%s699] sm:$0xff]
                  %702 = vst [vmem:[%s700] sm:$0xff] %v701
                  %v703 = vld [vmem:[%s699 + $0x8] sm:$0xff]
                  %704 = vst [vmem:[%s700 + $0x8] sm:$0xff] %v703
                  %v705 = vld [vmem:[%s699 + $0x10] sm:$0xff]
                  %706 = vst [vmem:[%s700 + $0x10] sm:$0xff] %v705
                  %v707 = vld [vmem:[%s699 + $0x18] sm:$0xff]
                  %708 = vst [vmem:[%s700 + $0x18] sm:$0xff] %v707
                  %v709 = vld [vmem:[%s699 + $0x20] sm:$0xff]
                  %710 = vst [vmem:[%s700 + $0x20] sm:$0xff] %v709
                  %v711 = vld [vmem:[%s699 + $0x28] sm:$0xff]
                  %712 = vst [vmem:[%s700 + $0x28] sm:$0xff] %v711
                  %v713 = vld [vmem:[%s699 + $0x30] sm:$0xff]
                  %714 = vst [vmem:[%s700 + $0x30] sm:$0xff] %v713
                  %v715 = vld [vmem:[%s699 + $0x38] sm:$0xff]
                  %716 = vst [vmem:[%s700 + $0x38] sm:$0xff] %v715
                  %v717 = vld [vmem:[%s699 + $0x40] sm:$0xff]
                  %718 = vst [vmem:[%s700 + $0x40] sm:$0xff] %v717
                  %v719 = vld [vmem:[%s699 + $0x48] sm:$0xff]
                  %720 = vst [vmem:[%s700 + $0x48] sm:$0xff] %v719
                  %v721 = vld [vmem:[%s699 + $0x50] sm:$0xff]
                  %722 = vst [vmem:[%s700 + $0x50] sm:$0xff] %v721
                  %v723 = vld [vmem:[%s699 + $0x58] sm:$0xff]
                  %724 = vst [vmem:[%s700 + $0x58] sm:$0xff] %v723
                  %v725 = vld [vmem:[%s699 + $0x60] sm:$0xff]
                  %726 = vst [vmem:[%s700 + $0x60] sm:$0xff] %v725
                  %s727 = sadd.s32 1, %s698
                  %p728 = scmp.ge.s32.totalorder %s727, %s690
                  %s729 = scalar_select %p728, 0, %s727
                  %s730 = smul.u32 %s729, 104
                  %s731 = smul.u32 %s729, 104
                  %s732 = scalar_lea.vmem %s599, %s730 [#allocation2]
                  %s733 = scalar_lea.vmem %s610, %s731
                $region79: #{tpu_custom_call.1} parent=73 // loop_footer
                  %s695 = sadd.s32 %s693, 1
                $region80: #{tpu_custom_call.1} parent=73 // loop_footer_branch
                  %692 = sbr.rel target = $region76
                $region81: #{tpu_custom_call.1} parent=73 // loop_exit
                  _
                %s734 = sdiv.u32.pop %s606, 13
                %s735 = srem.u32.pop %s606, 13
                %s736 = smul.u32 %s734, 13
                %s737 = smul.u32 8, %s736
                %s738 = scalar_lea.vmem %s599, %s737 [#allocation2]
                %s739 = smul.u32 8, %s736
                %s740 = scalar_lea.vmem %s610, %s739
                // While loop
                $region82: #{tpu_custom_call.1} parent=73 // loop_pre_header
                  _
                $region83: #{tpu_custom_call.1} parent=73 // loop_header
                  %s742 = sphi 0, %s744
                  %p743 = scmp.ge.s32.totalorder %s742, %s735
                  %s747 = sphi 0, %s754
                  %s748 = sphi %s738, %s757
                  %s749 = sphi %s740, %s758
                $region84: #{tpu_custom_call.1} parent=73 // loop_header_branch
                  %746 = sbr.rel (%p743) target = $region88
                $region85: #{tpu_custom_call.1} parent=73 // loop_body
                  %v750 = vld [vmem:[%s748] sm:$0xff]
                  %751 = vst [vmem:[%s749] sm:$0xff] %v750
                  %s752 = sadd.s32 1, %s747
                  %p753 = scmp.ge.s32.totalorder %s752, %s735
                  %s754 = scalar_select %p753, 0, %s752
                  %s755 = smul.u32 %s754, 8
                  %s756 = smul.u32 %s754, 8
                  %s757 = scalar_lea.vmem %s738, %s755 [#allocation2]
                  %s758 = scalar_lea.vmem %s740, %s756
                $region86: #{tpu_custom_call.1} parent=73 // loop_footer
                  %s744 = sadd.s32 %s742, 1
                $region87: #{tpu_custom_call.1} parent=73 // loop_footer_branch
                  %741 = sbr.rel target = $region83
                $region88: #{tpu_custom_call.1} parent=73 // loop_exit
                  _
              $region74: #{tpu_custom_call.1} parent=51 // pred_fallthru
                _
              // Predicated region
              $region89: #{tpu_custom_call.1} parent=51 // pred_check
                _
              $region90: #{tpu_custom_call.1} parent=51 // pred_check_branch
                %760 = sbr.rel target = $region92
              $region91: #{tpu_custom_call.1} parent=51 // pred_region
                _
              $region92: #{tpu_custom_call.1} parent=51 // pred_fallthru
                _
            $region52: #{tpu_custom_call.1} parent=47 // pred_fallthru
              _
            // Predicated region
            $region53: #{tpu_custom_call.1} parent=47 // pred_check
              _
            $region54: #{tpu_custom_call.1} parent=47 // pred_check_branch
              %617 = sbr.rel target = $region56
            $region55: #{tpu_custom_call.1} parent=47 // pred_region
              %s619 = sdiv.u32.pop %s606, 13
              %s620 = srem.u32.pop %s606, 13
              // While loop
              $region57: #{tpu_custom_call.1} parent=55 // loop_pre_header
                _
              $region58: #{tpu_custom_call.1} parent=55 // loop_header
                %s622 = sphi 0, %s624
                %p623 = scmp.ge.s32.totalorder %s622, %s619
                %s627 = sphi 0, %s658
                %s628 = sphi %s599, %s661
                %s629 = sphi %s610, %s662
              $region59: #{tpu_custom_call.1} parent=55 // loop_header_branch
                %626 = sbr.rel (%p623) target = $region63
              $region60: #{tpu_custom_call.1} parent=55 // loop_body
                %v630 = vld [vmem:[%s628] sm:$0xff]
                %631 = vst [vmem:[%s629] sm:$0xff] %v630
                %v632 = vld [vmem:[%s628 + $0x8] sm:$0xff]
                %633 = vst [vmem:[%s629 + $0x8] sm:$0xff] %v632
                %v634 = vld [vmem:[%s628 + $0x10] sm:$0xff]
                %635 = vst [vmem:[%s629 + $0x10] sm:$0xff] %v634
                %v636 = vld [vmem:[%s628 + $0x18] sm:$0xff]
                %637 = vst [vmem:[%s629 + $0x18] sm:$0xff] %v636
                %v638 = vld [vmem:[%s628 + $0x20] sm:$0xff]
                %639 = vst [vmem:[%s629 + $0x20] sm:$0xff] %v638
                %v640 = vld [vmem:[%s628 + $0x28] sm:$0xff]
                %641 = vst [vmem:[%s629 + $0x28] sm:$0xff] %v640
                %v642 = vld [vmem:[%s628 + $0x30] sm:$0xff]
                %643 = vst [vmem:[%s629 + $0x30] sm:$0xff] %v642
                %v644 = vld [vmem:[%s628 + $0x38] sm:$0xff]
                %645 = vst [vmem:[%s629 + $0x38] sm:$0xff] %v644
                %v646 = vld [vmem:[%s628 + $0x40] sm:$0xff]
                %647 = vst [vmem:[%s629 + $0x40] sm:$0xff] %v646
                %v648 = vld [vmem:[%s628 + $0x48] sm:$0xff]
                %649 = vst [vmem:[%s629 + $0x48] sm:$0xff] %v648
                %v650 = vld [vmem:[%s628 + $0x50] sm:$0xff]
                %651 = vst [vmem:[%s629 + $0x50] sm:$0xff] %v650
                %v652 = vld [vmem:[%s628 + $0x58] sm:$0xff]
                %653 = vst [vmem:[%s629 + $0x58] sm:$0xff] %v652
                %v654 = vld [vmem:[%s628 + $0x60] sm:$0xff]
                %655 = vst [vmem:[%s629 + $0x60] sm:$0xff] %v654
                %s656 = sadd.s32 1, %s627
                %p657 = scmp.ge.s32.totalorder %s656, %s619
                %s658 = scalar_select %p657, 0, %s656
                %s659 = smul.u32 %s658, 104
                %s660 = smul.u32 %s658, 104
                %s661 = scalar_lea.vmem %s599, %s659 [#allocation2]
                %s662 = scalar_lea.vmem %s610, %s660
              $region61: #{tpu_custom_call.1} parent=55 // loop_footer
                %s624 = sadd.s32 %s622, 1
              $region62: #{tpu_custom_call.1} parent=55 // loop_footer_branch
                %621 = sbr.rel target = $region58
              $region63: #{tpu_custom_call.1} parent=55 // loop_exit
                _
              %s663 = sdiv.u32.pop %s606, 13
              %s664 = srem.u32.pop %s606, 13
              %s665 = smul.u32 %s663, 13
              %s666 = smul.u32 8, %s665
              %s667 = scalar_lea.vmem %s599, %s666 [#allocation2]
              %s668 = smul.u32 8, %s665
              %s669 = scalar_lea.vmem %s610, %s668
              // While loop
              $region64: #{tpu_custom_call.1} parent=55 // loop_pre_header
                _
              $region65: #{tpu_custom_call.1} parent=55 // loop_header
                %s671 = sphi 0, %s673
                %p672 = scmp.ge.s32.totalorder %s671, %s664
                %s676 = sphi 0, %s683
                %s677 = sphi %s667, %s686
                %s678 = sphi %s669, %s687
              $region66: #{tpu_custom_call.1} parent=55 // loop_header_branch
                %675 = sbr.rel (%p672) target = $region70
              $region67: #{tpu_custom_call.1} parent=55 // loop_body
                %v679 = vld [vmem:[%s677] sm:$0xff]
                %680 = vst [vmem:[%s678] sm:$0xff] %v679
                %s681 = sadd.s32 1, %s676
                %p682 = scmp.ge.s32.totalorder %s681, %s664
                %s683 = scalar_select %p682, 0, %s681
                %s684 = smul.u32 %s683, 8
                %s685 = smul.u32 %s683, 8
                %s686 = scalar_lea.vmem %s667, %s684 [#allocation2]
                %s687 = scalar_lea.vmem %s669, %s685
              $region68: #{tpu_custom_call.1} parent=55 // loop_footer
                %s673 = sadd.s32 %s671, 1
              $region69: #{tpu_custom_call.1} parent=55 // loop_footer_branch
                %670 = sbr.rel target = $region65
              $region70: #{tpu_custom_call.1} parent=55 // loop_exit
                _
            $region56: #{tpu_custom_call.1} parent=47 // pred_fallthru
              _
          $region48: #{tpu_custom_call.1} parent=43 // pred_fallthru
            _
          %761 = vnop
        $region44: #{tpu_custom_call.1} parent=39 // pred_fallthru
          _
      $region40: #{tpu_custom_call.1} parent=5 // pred_fallthru
        _
      %p762 = scmp.le.s32.totalorder 2, %s11
      // Predicated region
      $region93: #{tpu_custom_call.1} parent=5 // pred_check
        %p763 = pneg %p762
      $region94: #{tpu_custom_call.1} parent=5 // pred_check_branch
        %765 = sbr.rel (%p763) target = $region96
      $region95: #{tpu_custom_call.1} parent=5 // pred_region
        %s766 = ssub.s32 %s11, 2
        // Predicated region
        $region97: #{tpu_custom_call.1} parent=95 // pred_check
          %p767 = pneg %p150
        $region98: #{tpu_custom_call.1} parent=95 // pred_check_branch
          %769 = sbr.rel (%p767) target = $region100
        $region99: #{tpu_custom_call.1} parent=95 // pred_region
          %s770 = sand.u32 %s135, 1
          %s771 = sand.u32 %s135, 1
          %s772 = smul.addr %s771, 104
          %s773 = scalar_lea.vmem [#allocation2], %s772
        $region100: #{tpu_custom_call.1} parent=95 // pred_fallthru
          _
      $region96: #{tpu_custom_call.1} parent=5 // pred_fallthru
        _
    $region6: #{tpu_custom_call.1} parent=1 // loop_footer
      %s15 = sadd.s32 1, %s11
    $region7: #{tpu_custom_call.1} parent=1 // loop_footer_branch
      %10 = sbr.rel target = $region3
    $region8: #{tpu_custom_call.1} parent=1 // loop_exit
      _

</llo_original>
